<compile_context>
chip_gen: v7x
topology: tpu7x:2x2x1
jax: 0.10.0
libtpu: 0.0.40
codegen_flags: <defaults>
</compile_context>

<pallas_src>
import functools

import jax
import jax.numpy as jnp
from jax import lax
from jax.experimental import pallas as pl
from jax.experimental.pallas import tpu as pltpu


def _inverted_residual_kernel(*refs, stride, has_expand, use_res):
    if has_expand:
        (x_ref, w1_ref, s1_ref, b1_ref, wd_ref, s2_ref, b2_ref,
         w3_ref, s3_ref, b3_ref, o_ref, pad_ref) = refs
    else:
        (x_ref, wd_ref, s2_ref, b2_ref, w3_ref, s3_ref, b3_ref,
         o_ref, pad_ref) = refs
        w1_ref = s1_ref = b1_ref = None

    _, H, W, Cin = x_ref.shape
    _, Ho, Wo, Cout = o_ref.shape
    Chid = pad_ref.shape[-1]

    x = x_ref[0].astype(jnp.float32)                    # (H, W, Cin)

    # ---- 1) expand: 1x1 conv (channel matmul on MXU) + folded BN + ReLU6 ----
    if has_expand:
        h = jnp.dot(x.reshape(H * W, Cin), w1_ref[...].astype(jnp.float32),
                    preferred_element_type=jnp.float32)  # (H*W, Chid)
        h = h * s1_ref[...] + b1_ref[...]
        h = jnp.clip(h, 0.0, 6.0)
        h = h.reshape(H, W, Chid)
    else:
        h = x

    # ---- 2) depthwise 3x3, padding=1, stride in {1,2} --------------------
    # Zero-padded VMEM scratch; interior written at offset (1, 1).
    pad_ref[...] = jnp.zeros_like(pad_ref)
    pad_ref[1:H + 1, 1:W + 1, :] = h

    acc = jnp.zeros((Ho, Wo, Chid), jnp.float32)
    for kh in range(3):
        for kw in range(3):
            if stride == 1:
                patch = pad_ref[kh:kh + Ho, kw:kw + Wo, :]
            else:
                patch = pad_ref[pl.ds(kh, Ho, stride), pl.ds(kw, Wo, stride), :]
            w_tap = wd_ref[3 * kh + kw].reshape(1, 1, Chid)   # (1, 1, Chid)
            acc = acc + patch * w_tap
    h2 = acc * s2_ref[...].reshape(1, 1, Chid) + b2_ref[...].reshape(1, 1, Chid)
    h2 = jnp.clip(h2, 0.0, 6.0)

    # ---- 3) project: 1x1 conv (MXU) + folded BN (no activation) ----------
    out = jnp.dot(h2.reshape(Ho * Wo, Chid), w3_ref[...].astype(jnp.float32),
                  preferred_element_type=jnp.float32)     # (Ho*Wo, Cout)
    out = out * s3_ref[...] + b3_ref[...]
    out = out.reshape(Ho, Wo, Cout)

    if use_res:
        out = out + x

    o_ref[0] = out.astype(o_ref.dtype)


def _fold_bn(gamma, beta, mean, var, eps=1e-5):
    scale = gamma / jnp.sqrt(var + eps)
    bias = beta - mean * scale
    return scale.astype(jnp.float32), bias.astype(jnp.float32)


def inverted_residual(x_nchw, params, *, inp, oup, stride, expand_ratio):
    """Pallas equivalent of InvertedResidual.forward (inference-mode BN)."""
    assert stride in (1, 2)
    hidden = int(round(inp * expand_ratio))
    has_expand = expand_ratio != 1
    use_res = (stride == 1) and (inp == oup)

    B, C, H, W = x_nchw.shape
    assert C == inp
    Ho = (H + 2 - 3) // stride + 1
    Wo = (W + 2 - 3) // stride + 1

    x = jnp.transpose(x_nchw, (0, 2, 3, 1))              # NHWC, channels on lanes
    dt = x.dtype

    args = [x]
    in_specs = [pl.BlockSpec((1, H, W, inp), lambda b: (b, 0, 0, 0))]

    if has_expand:
        w1 = params["w_expand"].reshape(hidden, inp).T.astype(dt)   # (inp, hidden)
        s1, b1 = _fold_bn(*params["bn_expand"])
        args += [w1, s1.reshape(1, hidden), b1.reshape(1, hidden)]
        in_specs += [pl.BlockSpec((inp, hidden), lambda b: (0, 0)),
                     pl.BlockSpec((1, hidden), lambda b: (0, 0)),
                     pl.BlockSpec((1, hidden), lambda b: (0, 0))]

    # depthwise weight (hidden, 1, 3, 3) -> (9, 1, hidden), row = 3*kh + kw
    wd = params["w_dw"].reshape(hidden, 9).T.reshape(9, 1, hidden).astype(dt)
    s2, b2 = _fold_bn(*params["bn_dw"])
    w3 = params["w_proj"].reshape(oup, hidden).T.astype(dt)         # (hidden, oup)
    s3, b3 = _fold_bn(*params["bn_proj"])
    args += [wd, s2.reshape(1, hidden), b2.reshape(1, hidden),
             w3, s3.reshape(1, oup), b3.reshape(1, oup)]
    in_specs += [pl.BlockSpec((9, 1, hidden), lambda b: (0, 0, 0)),
                 pl.BlockSpec((1, hidden), lambda b: (0, 0)),
                 pl.BlockSpec((1, hidden), lambda b: (0, 0)),
                 pl.BlockSpec((hidden, oup), lambda b: (0, 0)),
                 pl.BlockSpec((1, oup), lambda b: (0, 0)),
                 pl.BlockSpec((1, oup), lambda b: (0, 0))]

    kernel = functools.partial(_inverted_residual_kernel, stride=stride,
                               has_expand=has_expand, use_res=use_res)

    flops = (2 * B * H * W * inp * (hidden if has_expand else 0)
             + 2 * B * Ho * Wo * 9 * hidden
             + 2 * B * Ho * Wo * hidden * oup)
    bytes_accessed = ((x.size + B * Ho * Wo * oup) * x.dtype.itemsize
                      + sum(a.size * a.dtype.itemsize for a in args[1:]))

    out_nhwc = pl.pallas_call(
        kernel,
        out_shape=jax.ShapeDtypeStruct((B, Ho, Wo, oup), dt),
        grid_spec=pltpu.PrefetchScalarGridSpec(
            num_scalar_prefetch=0,
            grid=(B,),
            in_specs=in_specs,
            out_specs=pl.BlockSpec((1, Ho, Wo, oup), lambda b: (b, 0, 0, 0)),
            scratch_shapes=[pltpu.VMEM((H + 2, W + 2, hidden), jnp.float32)],
        ),
        compiler_params=pltpu.CompilerParams(
            dimension_semantics=("parallel",),
        ),
        cost_estimate=pl.CostEstimate(flops=flops, transcendentals=0,
                                      bytes_accessed=bytes_accessed),
    )(*args)

    return jnp.transpose(out_nhwc, (0, 3, 1, 2))          # back to NCHW


def inverted_residual_ref(x_nchw, params, *, inp, oup, stride, expand_ratio):
    """Pure-JAX reference (eval-mode BN), independent of the kernel."""
    hidden = int(round(inp * expand_ratio))
    has_expand = expand_ratio != 1
    use_res = (stride == 1) and (inp == oup)
    dn = ("NHWC", "HWIO", "NHWC")

    x = jnp.transpose(x_nchw, (0, 2, 3, 1)).astype(jnp.float32)
    h = x
    if has_expand:
        w1 = jnp.transpose(params["w_expand"], (2, 3, 1, 0)).astype(jnp.float32)
        h = lax.conv_general_dilated(h, w1, (1, 1), "VALID",
                                     dimension_numbers=dn,
                                     precision=lax.Precision.HIGHEST)
        s, b = _fold_bn(*params["bn_expand"])
        h = jnp.clip(h * s + b, 0.0, 6.0)

    wd = jnp.transpose(params["w_dw"], (2, 3, 1, 0)).astype(jnp.float32)  # (3,3,1,hid)
    h = lax.conv_general_dilated(h, wd, (stride, stride), ((1, 1), (1, 1)),
                                 dimension_numbers=dn,
                                 feature_group_count=hidden,
                                 precision=lax.Precision.HIGHEST)
    s, b = _fold_bn(*params["bn_dw"])
    h = jnp.clip(h * s + b, 0.0, 6.0)

    w3 = jnp.transpose(params["w_proj"], (2, 3, 1, 0)).astype(jnp.float32)
    h = lax.conv_general_dilated(h, w3, (1, 1), "VALID",
                                 dimension_numbers=dn,
                                 precision=lax.Precision.HIGHEST)
    s, b = _fold_bn(*params["bn_proj"])
    h = h * s + b
    if use_res:
        h = h + x
    return jnp.transpose(h, (0, 3, 1, 2))


if __name__ == "__main__":
    key = jax.random.PRNGKey(0)
    B, inp, oup, H, W = 2, 8, 8, 16, 16
    stride, expand_ratio = 1, 4                 # residual path exercised
    hidden = int(round(inp * expand_ratio))     # 32

    ks = jax.random.split(key, 8)
    x = jax.random.normal(ks[0], (B, inp, H, W), dtype=jnp.float32)

    def bn_params(k, c):
        k1, k2, k3, k4 = jax.random.split(k, 4)
        gamma = 1.0 + 0.1 * jax.random.normal(k1, (c,), jnp.float32)
        beta = 0.1 * jax.random.normal(k2, (c,), jnp.float32)
        mean = 0.1 * jax.random.normal(k3, (c,), jnp.float32)
        var = jnp.abs(1.0 + 0.1 * jax.random.normal(k4, (c,), jnp.float32))
        return (gamma, beta, mean, var)

    params = {
        "w_expand": 0.3 * jax.random.normal(ks[1], (hidden, inp, 1, 1), jnp.float32),
        "bn_expand": bn_params(ks[2], hidden),
        "w_dw": 0.3 * jax.random.normal(ks[3], (hidden, 1, 3, 3), jnp.float32),
        "bn_dw": bn_params(ks[4], hidden),
        "w_proj": 0.3 * jax.random.normal(ks[5], (oup, hidden, 1, 1), jnp.float32),
        "bn_proj": bn_params(ks[6], oup),
    }

    out = inverted_residual(x, params, inp=inp, oup=oup, stride=stride,
                            expand_ratio=expand_ratio)
    out = jax.block_until_ready(out)

    ref = inverted_residual_ref(x, params, inp=inp, oup=oup, stride=stride,
                                expand_ratio=expand_ratio)
    assert out.shape == (B, oup, H, W), out.shape
    max_err = float(jnp.max(jnp.abs(out - ref)))
    assert jnp.allclose(out, ref, atol=2e-3, rtol=2e-3), max_err

    print("KERNEL_OK")
</pallas_src>

<mosaic_0001>
module attributes {stable_mosaic.version = 11 : i64} {
  func.func @_inverted_residual_kernel(%arg0: i32, %arg1: memref<1x16x16x8xf32, #tpu.memory_space<vmem>>, %arg2: memref<8x32xf32, #tpu.memory_space<vmem>>, %arg3: memref<1x32xf32, #tpu.memory_space<vmem>>, %arg4: memref<1x32xf32, #tpu.memory_space<vmem>>, %arg5: memref<9x1x32xf32, #tpu.memory_space<vmem>>, %arg6: memref<1x32xf32, #tpu.memory_space<vmem>>, %arg7: memref<1x32xf32, #tpu.memory_space<vmem>>, %arg8: memref<32x8xf32, #tpu.memory_space<vmem>>, %arg9: memref<1x8xf32, #tpu.memory_space<vmem>>, %arg10: memref<1x8xf32, #tpu.memory_space<vmem>>, %arg11: memref<1x16x16x8xf32, #tpu.memory_space<vmem>>, %arg12: memref<18x18x32xf32, #tpu.memory_space<vmem>>) attributes {dimension_semantics = [#tpu.dimension_semantics<parallel>], iteration_bounds = array<i64: 2>, scalar_prefetch = 0 : i64, scratch_operands = 1 : i64, tpu.core_type = #tpu.core_type<tc>, window_params = [{transform_indices = @transform_0, window_bounds = array<i64: 1, 16, 16, 8>}, {pipeline_mode = #tpu.pipeline_mode<synchronous>, transform_indices = @transform_1, window_bounds = array<i64: 8, 32>}, {pipeline_mode = #tpu.pipeline_mode<synchronous>, transform_indices = @transform_2, window_bounds = array<i64: 1, 32>}, {pipeline_mode = #tpu.pipeline_mode<synchronous>, transform_indices = @transform_3, window_bounds = array<i64: 1, 32>}, {pipeline_mode = #tpu.pipeline_mode<synchronous>, transform_indices = @transform_4, window_bounds = array<i64: 9, 1, 32>}, {pipeline_mode = #tpu.pipeline_mode<synchronous>, transform_indices = @transform_5, window_bounds = array<i64: 1, 32>}, {pipeline_mode = #tpu.pipeline_mode<synchronous>, transform_indices = @transform_6, window_bounds = array<i64: 1, 32>}, {pipeline_mode = #tpu.pipeline_mode<synchronous>, transform_indices = @transform_7, window_bounds = array<i64: 32, 8>}, {pipeline_mode = #tpu.pipeline_mode<synchronous>, transform_indices = @transform_8, window_bounds = array<i64: 1, 8>}, {pipeline_mode = #tpu.pipeline_mode<synchronous>, transform_indices = @transform_9, window_bounds = array<i64: 1, 8>}, {transform_indices = @transform_10, window_bounds = array<i64: 1, 16, 16, 8>}]} {
    %c0 = arith.constant 0 : index
    %c0_0 = arith.constant 0 : index
    %c0_1 = arith.constant 0 : index
    %c0_2 = arith.constant 0 : index
    %0 = vector.load %arg1[%c0, %c0_0, %c0_1, %c0_2] : memref<1x16x16x8xf32, #tpu.memory_space<vmem>>, vector<1x16x16x8xf32>
    %1 = vector.shape_cast %0 : vector<1x16x16x8xf32> to vector<16x16x8xf32>
    %2 = vector.shape_cast %1 : vector<16x16x8xf32> to vector<256x8xf32>
    %c0_3 = arith.constant 0 : index
    %c0_4 = arith.constant 0 : index
    %3 = vector.load %arg2[%c0_3, %c0_4] : memref<8x32xf32, #tpu.memory_space<vmem>>, vector<8x32xf32>
    %cst = arith.constant dense<0.000000e+00> : vector<256x32xf32>
    %4 = tpu.matmul %2, %3, %cst {dimension_numbers = #tpu.dot_dimension_numbers<[1], [0], [0], [1], [0, 0, 1, 1], [], []>} : vector<256x8xf32>, vector<8x32xf32>, vector<256x32xf32> -> vector<256x32xf32>
    %c0_5 = arith.constant 0 : index
    %c0_6 = arith.constant 0 : index
    %5 = vector.load %arg3[%c0_5, %c0_6] : memref<1x32xf32, #tpu.memory_space<vmem>>, vector<1x32xf32>
    %6 = vector.broadcast %5 : vector<1x32xf32> to vector<256x32xf32>
    %7 = arith.mulf %4, %6 : vector<256x32xf32>
    %c0_7 = arith.constant 0 : index
    %c0_8 = arith.constant 0 : index
    %8 = vector.load %arg4[%c0_7, %c0_8] : memref<1x32xf32, #tpu.memory_space<vmem>>, vector<1x32xf32>
    %9 = vector.broadcast %8 : vector<1x32xf32> to vector<256x32xf32>
    %10 = arith.addf %7, %9 : vector<256x32xf32>
    %cst_9 = arith.constant 0.000000e+00 : f32
    %cst_10 = arith.constant 6.000000e+00 : f32
    %11 = vector.broadcast %cst_9 : f32 to vector<256x32xf32>
    %12 = arith.maximumf %11, %10 : vector<256x32xf32>
    %13 = vector.broadcast %cst_10 : f32 to vector<256x32xf32>
    %14 = arith.minimumf %13, %12 : vector<256x32xf32>
    %15 = vector.shape_cast %14 : vector<256x32xf32> to vector<16x16x32xf32>
    %cst_11 = arith.constant 0.000000e+00 : f32
    %16 = vector.broadcast %cst_11 : f32 to vector<18x18x32xf32>
    %c0_12 = arith.constant 0 : index
    %c0_13 = arith.constant 0 : index
    %c0_14 = arith.constant 0 : index
    %17 = vector.load %arg12[%c0_12, %c0_13, %c0_14] : memref<18x18x32xf32, #tpu.memory_space<vmem>>, vector<18x18x32xf32>
    tpu.vector_store %arg12[%c0_12, %c0_13, %c0_14], %16 {strides = array<i32>} : memref<18x18x32xf32, #tpu.memory_space<vmem>>, vector<18x18x32xf32>,
    %c1 = arith.constant 1 : index
    %c1_15 = arith.constant 1 : index
    %c0_16 = arith.constant 0 : index
    %18 = vector.load %arg12[%c1, %c1_15, %c0_16] : memref<18x18x32xf32, #tpu.memory_space<vmem>>, vector<16x16x32xf32>
    tpu.vector_store %arg12[%c1, %c1_15, %c0_16], %15 {strides = array<i32>} : memref<18x18x32xf32, #tpu.memory_space<vmem>>, vector<16x16x32xf32>,
    %cst_17 = arith.constant 0.000000e+00 : f32
    %19 = vector.broadcast %cst_17 : f32 to vector<16x16x32xf32>
    %c0_18 = arith.constant 0 : index
    %c0_19 = arith.constant 0 : index
    %c0_20 = arith.constant 0 : index
    %20 = vector.load %arg12[%c0_18, %c0_19, %c0_20] : memref<18x18x32xf32, #tpu.memory_space<vmem>>, vector<16x16x32xf32>
    %c0_21 = arith.constant 0 : index
    %c0_22 = arith.constant 0 : index
    %c0_23 = arith.constant 0 : index
    %21 = vector.load %arg5[%c0_21, %c0_22, %c0_23] : memref<9x1x32xf32, #tpu.memory_space<vmem>>, vector<1x1x32xf32>
    %22 = vector.shape_cast %21 : vector<1x1x32xf32> to vector<1x32xf32>
    %23 = vector.shape_cast %22 : vector<1x32xf32> to vector<1x1x32xf32>
    %24 = vector.broadcast %23 : vector<1x1x32xf32> to vector<16x16x32xf32>
    %25 = arith.mulf %20, %24 : vector<16x16x32xf32>
    %26 = arith.addf %19, %25 : vector<16x16x32xf32>
    %c0_24 = arith.constant 0 : index
    %c1_25 = arith.constant 1 : index
    %c0_26 = arith.constant 0 : index
    %27 = vector.load %arg12[%c0_24, %c1_25, %c0_26] : memref<18x18x32xf32, #tpu.memory_space<vmem>>, vector<16x16x32xf32>
    %c1_27 = arith.constant 1 : index
    %c0_28 = arith.constant 0 : index
    %c0_29 = arith.constant 0 : index
    %28 = vector.load %arg5[%c1_27, %c0_28, %c0_29] : memref<9x1x32xf32, #tpu.memory_space<vmem>>, vector<1x1x32xf32>
    %29 = vector.shape_cast %28 : vector<1x1x32xf32> to vector<1x32xf32>
    %30 = vector.shape_cast %29 : vector<1x32xf32> to vector<1x1x32xf32>
    %31 = vector.broadcast %30 : vector<1x1x32xf32> to vector<16x16x32xf32>
    %32 = arith.mulf %27, %31 : vector<16x16x32xf32>
    %33 = arith.addf %26, %32 : vector<16x16x32xf32>
    %c0_30 = arith.constant 0 : index
    %c2 = arith.constant 2 : index
    %c0_31 = arith.constant 0 : index
    %34 = vector.load %arg12[%c0_30, %c2, %c0_31] : memref<18x18x32xf32, #tpu.memory_space<vmem>>, vector<16x16x32xf32>
    %c2_32 = arith.constant 2 : index
    %c0_33 = arith.constant 0 : index
    %c0_34 = arith.constant 0 : index
    %35 = vector.load %arg5[%c2_32, %c0_33, %c0_34] : memref<9x1x32xf32, #tpu.memory_space<vmem>>, vector<1x1x32xf32>
    %36 = vector.shape_cast %35 : vector<1x1x32xf32> to vector<1x32xf32>
    %37 = vector.shape_cast %36 : vector<1x32xf32> to vector<1x1x32xf32>
    %38 = vector.broadcast %37 : vector<1x1x32xf32> to vector<16x16x32xf32>
    %39 = arith.mulf %34, %38 : vector<16x16x32xf32>
    %40 = arith.addf %33, %39 : vector<16x16x32xf32>
    %c1_35 = arith.constant 1 : index
    %c0_36 = arith.constant 0 : index
    %c0_37 = arith.constant 0 : index
    %41 = vector.load %arg12[%c1_35, %c0_36, %c0_37] : memref<18x18x32xf32, #tpu.memory_space<vmem>>, vector<16x16x32xf32>
    %c3 = arith.constant 3 : index
    %c0_38 = arith.constant 0 : index
    %c0_39 = arith.constant 0 : index
    %42 = vector.load %arg5[%c3, %c0_38, %c0_39] : memref<9x1x32xf32, #tpu.memory_space<vmem>>, vector<1x1x32xf32>
    %43 = vector.shape_cast %42 : vector<1x1x32xf32> to vector<1x32xf32>
    %44 = vector.shape_cast %43 : vector<1x32xf32> to vector<1x1x32xf32>
    %45 = vector.broadcast %44 : vector<1x1x32xf32> to vector<16x16x32xf32>
    %46 = arith.mulf %41, %45 : vector<16x16x32xf32>
    %47 = arith.addf %40, %46 : vector<16x16x32xf32>
    %c1_40 = arith.constant 1 : index
    %c1_41 = arith.constant 1 : index
    %c0_42 = arith.constant 0 : index
    %48 = vector.load %arg12[%c1_40, %c1_41, %c0_42] : memref<18x18x32xf32, #tpu.memory_space<vmem>>, vector<16x16x32xf32>
    %c4 = arith.constant 4 : index
    %c0_43 = arith.constant 0 : index
    %c0_44 = arith.constant 0 : index
    %49 = vector.load %arg5[%c4, %c0_43, %c0_44] : memref<9x1x32xf32, #tpu.memory_space<vmem>>, vector<1x1x32xf32>
    %50 = vector.shape_cast %49 : vector<1x1x32xf32> to vector<1x32xf32>
    %51 = vector.shape_cast %50 : vector<1x32xf32> to vector<1x1x32xf32>
    %52 = vector.broadcast %51 : vector<1x1x32xf32> to vector<16x16x32xf32>
    %53 = arith.mulf %48, %52 : vector<16x16x32xf32>
    %54 = arith.addf %47, %53 : vector<16x16x32xf32>
    %c1_45 = arith.constant 1 : index
    %c2_46 = arith.constant 2 : index
    %c0_47 = arith.constant 0 : index
    %55 = vector.load %arg12[%c1_45, %c2_46, %c0_47] : memref<18x18x32xf32, #tpu.memory_space<vmem>>, vector<16x16x32xf32>
    %c5 = arith.constant 5 : index
    %c0_48 = arith.constant 0 : index
    %c0_49 = arith.constant 0 : index
    %56 = vector.load %arg5[%c5, %c0_48, %c0_49] : memref<9x1x32xf32, #tpu.memory_space<vmem>>, vector<1x1x32xf32>
    %57 = vector.shape_cast %56 : vector<1x1x32xf32> to vector<1x32xf32>
    %58 = vector.shape_cast %57 : vector<1x32xf32> to vector<1x1x32xf32>
    %59 = vector.broadcast %58 : vector<1x1x32xf32> to vector<16x16x32xf32>
    %60 = arith.mulf %55, %59 : vector<16x16x32xf32>
    %61 = arith.addf %54, %60 : vector<16x16x32xf32>
    %c2_50 = arith.constant 2 : index
    %c0_51 = arith.constant 0 : index
    %c0_52 = arith.constant 0 : index
    %62 = vector.load %arg12[%c2_50, %c0_51, %c0_52] : memref<18x18x32xf32, #tpu.memory_space<vmem>>, vector<16x16x32xf32>
    %c6 = arith.constant 6 : index
    %c0_53 = arith.constant 0 : index
    %c0_54 = arith.constant 0 : index
    %63 = vector.load %arg5[%c6, %c0_53, %c0_54] : memref<9x1x32xf32, #tpu.memory_space<vmem>>, vector<1x1x32xf32>
    %64 = vector.shape_cast %63 : vector<1x1x32xf32> to vector<1x32xf32>
    %65 = vector.shape_cast %64 : vector<1x32xf32> to vector<1x1x32xf32>
    %66 = vector.broadcast %65 : vector<1x1x32xf32> to vector<16x16x32xf32>
    %67 = arith.mulf %62, %66 : vector<16x16x32xf32>
    %68 = arith.addf %61, %67 : vector<16x16x32xf32>
    %c2_55 = arith.constant 2 : index
    %c1_56 = arith.constant 1 : index
    %c0_57 = arith.constant 0 : index
    %69 = vector.load %arg12[%c2_55, %c1_56, %c0_57] : memref<18x18x32xf32, #tpu.memory_space<vmem>>, vector<16x16x32xf32>
    %c7 = arith.constant 7 : index
    %c0_58 = arith.constant 0 : index
    %c0_59 = arith.constant 0 : index
    %70 = vector.load %arg5[%c7, %c0_58, %c0_59] : memref<9x1x32xf32, #tpu.memory_space<vmem>>, vector<1x1x32xf32>
    %71 = vector.shape_cast %70 : vector<1x1x32xf32> to vector<1x32xf32>
    %72 = vector.shape_cast %71 : vector<1x32xf32> to vector<1x1x32xf32>
    %73 = vector.broadcast %72 : vector<1x1x32xf32> to vector<16x16x32xf32>
    %74 = arith.mulf %69, %73 : vector<16x16x32xf32>
    %75 = arith.addf %68, %74 : vector<16x16x32xf32>
    %c2_60 = arith.constant 2 : index
    %c2_61 = arith.constant 2 : index
    %c0_62 = arith.constant 0 : index
    %76 = vector.load %arg12[%c2_60, %c2_61, %c0_62] : memref<18x18x32xf32, #tpu.memory_space<vmem>>, vector<16x16x32xf32>
    %c8 = arith.constant 8 : index
    %c0_63 = arith.constant 0 : index
    %c0_64 = arith.constant 0 : index
    %77 = vector.load %arg5[%c8, %c0_63, %c0_64] : memref<9x1x32xf32, #tpu.memory_space<vmem>>, vector<1x1x32xf32>
    %78 = vector.shape_cast %77 : vector<1x1x32xf32> to vector<1x32xf32>
    %79 = vector.shape_cast %78 : vector<1x32xf32> to vector<1x1x32xf32>
    %80 = vector.broadcast %79 : vector<1x1x32xf32> to vector<16x16x32xf32>
    %81 = arith.mulf %76, %80 : vector<16x16x32xf32>
    %82 = arith.addf %75, %81 : vector<16x16x32xf32>
    %c0_65 = arith.constant 0 : index
    %c0_66 = arith.constant 0 : index
    %83 = vector.load %arg6[%c0_65, %c0_66] : memref<1x32xf32, #tpu.memory_space<vmem>>, vector<1x32xf32>
    %84 = vector.shape_cast %83 : vector<1x32xf32> to vector<1x1x32xf32>
    %85 = vector.broadcast %84 : vector<1x1x32xf32> to vector<16x16x32xf32>
    %86 = arith.mulf %82, %85 : vector<16x16x32xf32>
    %c0_67 = arith.constant 0 : index
    %c0_68 = arith.constant 0 : index
    %87 = vector.load %arg7[%c0_67, %c0_68] : memref<1x32xf32, #tpu.memory_space<vmem>>, vector<1x32xf32>
    %88 = vector.shape_cast %87 : vector<1x32xf32> to vector<1x1x32xf32>
    %89 = vector.broadcast %88 : vector<1x1x32xf32> to vector<16x16x32xf32>
    %90 = arith.addf %86, %89 : vector<16x16x32xf32>
    %cst_69 = arith.constant 0.000000e+00 : f32
    %cst_70 = arith.constant 6.000000e+00 : f32
    %91 = vector.broadcast %cst_69 : f32 to vector<16x16x32xf32>
    %92 = arith.maximumf %91, %90 : vector<16x16x32xf32>
    %93 = vector.broadcast %cst_70 : f32 to vector<16x16x32xf32>
    %94 = arith.minimumf %93, %92 : vector<16x16x32xf32>
    %95 = vector.shape_cast %94 : vector<16x16x32xf32> to vector<256x32xf32>
    %c0_71 = arith.constant 0 : index
    %c0_72 = arith.constant 0 : index
    %96 = vector.load %arg8[%c0_71, %c0_72] : memref<32x8xf32, #tpu.memory_space<vmem>>, vector<32x8xf32>
    %cst_73 = arith.constant dense<0.000000e+00> : vector<256x8xf32>
    %97 = tpu.matmul %95, %96, %cst_73 {dimension_numbers = #tpu.dot_dimension_numbers<[1], [0], [0], [1], [0, 0, 1, 1], [], []>} : vector<256x32xf32>, vector<32x8xf32>, vector<256x8xf32> -> vector<256x8xf32>
    %c0_74 = arith.constant 0 : index
    %c0_75 = arith.constant 0 : index
    %98 = vector.load %arg9[%c0_74, %c0_75] : memref<1x8xf32, #tpu.memory_space<vmem>>, vector<1x8xf32>
    %99 = vector.broadcast %98 : vector<1x8xf32> to vector<256x8xf32>
    %100 = arith.mulf %97, %99 : vector<256x8xf32>
    %c0_76 = arith.constant 0 : index
    %c0_77 = arith.constant 0 : index
    %101 = vector.load %arg10[%c0_76, %c0_77] : memref<1x8xf32, #tpu.memory_space<vmem>>, vector<1x8xf32>
    %102 = vector.broadcast %101 : vector<1x8xf32> to vector<256x8xf32>
    %103 = arith.addf %100, %102 : vector<256x8xf32>
    %104 = vector.shape_cast %103 : vector<256x8xf32> to vector<16x16x8xf32>
    %105 = arith.addf %104, %1 : vector<16x16x8xf32>
    %c0_78 = arith.constant 0 : index
    %c0_79 = arith.constant 0 : index
    %c0_80 = arith.constant 0 : index
    %c0_81 = arith.constant 0 : index
    %106 = vector.load %arg11[%c0_78, %c0_79, %c0_80, %c0_81] : memref<1x16x16x8xf32, #tpu.memory_space<vmem>>, vector<1x16x16x8xf32>
    %107 = vector.shape_cast %106 : vector<1x16x16x8xf32> to vector<16x16x8xf32>
    %108 = vector.shape_cast %105 : vector<16x16x8xf32> to vector<1x16x16x8xf32>
    tpu.vector_store %arg11[%c0_78, %c0_79, %c0_80, %c0_81], %108 {strides = array<i32>} : memref<1x16x16x8xf32, #tpu.memory_space<vmem>>, vector<1x16x16x8xf32>,
    return
  }
  func.func @transform_0(%arg0: i32) -> (i32, i32, i32, i32) {
    %c0_i32 = arith.constant 0 : i32
    %c0_i32_0 = arith.constant 0 : i32
    %c0_i32_1 = arith.constant 0 : i32
    %c0_i32_2 = arith.constant 0 : i32
    return %arg0, %c0_i32, %c0_i32_0, %c0_i32_1 : i32, i32, i32, i32
  }
  func.func @transform_1(%arg0: i32) -> (i32, i32) {
    %c0_i32 = arith.constant 0 : i32
    %c0_i32_0 = arith.constant 0 : i32
    %c0_i32_1 = arith.constant 0 : i32
    return %c0_i32, %c0_i32_0 : i32, i32
  }
  func.func @transform_2(%arg0: i32) -> (i32, i32) {
    %c0_i32 = arith.constant 0 : i32
    %c0_i32_0 = arith.constant 0 : i32
    %c0_i32_1 = arith.constant 0 : i32
    return %c0_i32, %c0_i32_0 : i32, i32
  }
  func.func @transform_3(%arg0: i32) -> (i32, i32) {
    %c0_i32 = arith.constant 0 : i32
    %c0_i32_0 = arith.constant 0 : i32
    %c0_i32_1 = arith.constant 0 : i32
    return %c0_i32, %c0_i32_0 : i32, i32
  }
  func.func @transform_4(%arg0: i32) -> (i32, i32, i32) {
    %c0_i32 = arith.constant 0 : i32
    %c0_i32_0 = arith.constant 0 : i32
    %c0_i32_1 = arith.constant 0 : i32
    %c0_i32_2 = arith.constant 0 : i32
    return %c0_i32, %c0_i32_0, %c0_i32_1 : i32, i32, i32
  }
  func.func @transform_5(%arg0: i32) -> (i32, i32) {
    %c0_i32 = arith.constant 0 : i32
    %c0_i32_0 = arith.constant 0 : i32
    %c0_i32_1 = arith.constant 0 : i32
    return %c0_i32, %c0_i32_0 : i32, i32
  }
  func.func @transform_6(%arg0: i32) -> (i32, i32) {
    %c0_i32 = arith.constant 0 : i32
    %c0_i32_0 = arith.constant 0 : i32
    %c0_i32_1 = arith.constant 0 : i32
    return %c0_i32, %c0_i32_0 : i32, i32
  }
  func.func @transform_7(%arg0: i32) -> (i32, i32) {
    %c0_i32 = arith.constant 0 : i32
    %c0_i32_0 = arith.constant 0 : i32
    %c0_i32_1 = arith.constant 0 : i32
    return %c0_i32, %c0_i32_0 : i32, i32
  }
  func.func @transform_8(%arg0: i32) -> (i32, i32) {
    %c0_i32 = arith.constant 0 : i32
    %c0_i32_0 = arith.constant 0 : i32
    %c0_i32_1 = arith.constant 0 : i32
    return %c0_i32, %c0_i32_0 : i32, i32
  }
  func.func @transform_9(%arg0: i32) -> (i32, i32) {
    %c0_i32 = arith.constant 0 : i32
    %c0_i32_0 = arith.constant 0 : i32
    %c0_i32_1 = arith.constant 0 : i32
    return %c0_i32, %c0_i32_0 : i32, i32
  }
  func.func @transform_10(%arg0: i32) -> (i32, i32, i32, i32) {
    %c0_i32 = arith.constant 0 : i32
    %c0_i32_0 = arith.constant 0 : i32
    %c0_i32_1 = arith.constant 0 : i32
    %c0_i32_2 = arith.constant 0 : i32
    return %arg0, %c0_i32, %c0_i32_0, %c0_i32_1 : i32, i32, i32, i32
  }
}

</mosaic_0001>

<llo_original>
// kernel: tpu_custom_call.1
$region0: #{tpu_custom_call.1}
  #allocation0 [shape = 'u32[]', space=smem, size = 0x4, offset = 0x4, fixed_abs, tag = 'smem constant byte address 0x4 - core index']
  #allocation1 [shape = 'u32[144,128]{1,0:T(1,128)}', space=vmem, size = 0x12000, scoped, tag = 'internal scratch']
  #allocation2 [shape = 'f32[18,18,32]{2,1,0:T(8,128)}', space=vmem, size = 0x36000, scoped, tag = 'scratch operand']
  %s0 = inlined_call_operand.vmem [shape: f32[2,16,16,8], index: 0, kind: input, shape index: {}]
  %s1 = inlined_call_operand.vmem [shape: f32[8,32], index: 1, kind: input, shape index: {}]
  %s2 = inlined_call_operand.vmem [shape: f32[1,32], index: 2, kind: input, shape index: {}]
  %s3 = inlined_call_operand.vmem [shape: f32[1,32], index: 3, kind: input, shape index: {}]
  %s4 = inlined_call_operand.vmem [shape: f32[9,1,32], index: 4, kind: input, shape index: {}]
  %s5 = inlined_call_operand.vmem [shape: f32[1,32], index: 5, kind: input, shape index: {}]
  %s6 = inlined_call_operand.vmem [shape: f32[1,32], index: 6, kind: input, shape index: {}]
  %s7 = inlined_call_operand.vmem [shape: f32[32,8], index: 7, kind: input, shape index: {}]
  %s8 = inlined_call_operand.vmem [shape: f32[1,8], index: 8, kind: input, shape index: {}]
  %s9 = inlined_call_operand.vmem [shape: f32[1,8], index: 9, kind: input, shape index: {}]
  %s10 = inlined_call_operand.vmem [shape: f32[2,16,16,8], index: 10, kind: output, shape index: {}]
  %s11 = sld [smem:[#allocation0]]
  $region73: #{tpu_custom_call.1} parent=0
    _
  %s13 = ssub.s32 1, %s11
  %s14 = scalar_select 0, %s13, %s11
  loop: start=0, step=1, limit=4
  $region2: #{tpu_custom_call.1} parent=0 // loop_pre_header
    _
  $region3: #{tpu_custom_call.1} parent=0 // loop_header
    %s16 = sphi 0, %s20
    %p17 = scmp.ge.s32.totalorder %s16, 4
    %s26 = sphi 0, %s28
    %s29 = sphi 0, %s26
    %s30 = sphi 0, %s29
    %s46 = sphi 0, %s30
    %s50 = sphi 0, %s50
    %s52 = sphi 0, %s50
    %s53 = sphi 0, %s52
    %s67 = sphi 0, %s53
    %s71 = sphi 0, %s71
    %s73 = sphi 0, %s71
    %s74 = sphi 0, %s73
    %s88 = sphi 0, %s74
    %s92 = sphi 0, %s92
    %s94 = sphi 0, %s92
    %s95 = sphi 0, %s94
    %s109 = sphi 0, %s95
    %s113 = sphi 0, %s113
    %s115 = sphi 0, %s113
    %s116 = sphi 0, %s115
    %s130 = sphi 0, %s116
    %s134 = sphi 0, %s134
    %s136 = sphi 0, %s134
    %s137 = sphi 0, %s136
    %s151 = sphi 0, %s137
    %s155 = sphi 0, %s155
    %s157 = sphi 0, %s155
    %s158 = sphi 0, %s157
    %s172 = sphi 0, %s158
    %s176 = sphi 0, %s176
    %s178 = sphi 0, %s176
    %s179 = sphi 0, %s178
    %s193 = sphi 0, %s179
    %s197 = sphi 0, %s197
    %s199 = sphi 0, %s197
    %s200 = sphi 0, %s199
    %s214 = sphi 0, %s200
    %s218 = sphi 0, %s218
    %s220 = sphi 0, %s218
    %s221 = sphi 0, %s220
    %s235 = sphi 0, %s221
    %s241 = sphi 0, %s243
    %s244 = sphi 0, %s241
    %s245 = sphi 0, %s244
    %s261 = sphi 0, %s245
  $region4: #{tpu_custom_call.1} parent=0 // loop_header_branch
    %19 = sbr.rel (%p17) target = $region8
  $region5: #{tpu_custom_call.1} parent=0 // loop_body
    %s21 = ssub.s32 %s16, 1
    %s22 = ssub.s32 %s16, 2
    %s23 = sadd.s32 %s16, 1
    %s24 = ssub.s32 %s16, %s23
    %p25 = scmp.eq.s32.totalorder %s24, 0
    %s27 = sadd.s32 %s26, 1
    %s28 = scalar_select %p25, %s26, %s27
    %p31 = pneg %p25
    %p32 = scmp.eq.s32.totalorder %s16, 1
    %p33 = por %p31, %p32
    %p34 = scmp.ne.s32.totalorder %s26, %s29
    %p35 = scmp.eq.s32.totalorder %s16, 0
    %p36 = por %p34, %p35
    %p37 = scmp.ne.s32.totalorder %s26, %s29
    %p38 = scmp.eq.s32.totalorder %s21, 1
    %p39 = por %p37, %p38
    %p40 = scmp.ne.s32.totalorder %s29, %s30
    %p41 = scmp.eq.s32.totalorder %s21, 0
    %p42 = por %p40, %p41
    %p43 = scmp.ne.s32.totalorder %s29, %s30
    %p44 = scmp.eq.s32.totalorder %s22, 1
    %p45 = por %p43, %p44
    %p47 = scmp.ne.s32.totalorder %s30, %s46
    %p48 = scmp.eq.s32.totalorder %s22, 0
    %p49 = por %p47, %p48
    %s51 = sadd.s32 %s50, 1
    %p54 = scmp.eq.s32.totalorder %s16, 1
    %p55 = scmp.ne.s32.totalorder %s50, %s52
    %p56 = scmp.eq.s32.totalorder %s16, 0
    %p57 = por %p55, %p56
    %p58 = scmp.ne.s32.totalorder %s50, %s52
    %p59 = scmp.eq.s32.totalorder %s21, 1
    %p60 = por %p58, %p59
    %p61 = scmp.ne.s32.totalorder %s52, %s53
    %p62 = scmp.eq.s32.totalorder %s21, 0
    %p63 = por %p61, %p62
    %p64 = scmp.ne.s32.totalorder %s52, %s53
    %p65 = scmp.eq.s32.totalorder %s22, 1
    %p66 = por %p64, %p65
    %p68 = scmp.ne.s32.totalorder %s53, %s67
    %p69 = scmp.eq.s32.totalorder %s22, 0
    %p70 = por %p68, %p69
    %s72 = sadd.s32 %s71, 1
    %p75 = scmp.eq.s32.totalorder %s16, 1
    %p76 = scmp.ne.s32.totalorder %s71, %s73
    %p77 = scmp.eq.s32.totalorder %s16, 0
    %p78 = por %p76, %p77
    %p79 = scmp.ne.s32.totalorder %s71, %s73
    %p80 = scmp.eq.s32.totalorder %s21, 1
    %p81 = por %p79, %p80
    %p82 = scmp.ne.s32.totalorder %s73, %s74
    %p83 = scmp.eq.s32.totalorder %s21, 0
    %p84 = por %p82, %p83
    %p85 = scmp.ne.s32.totalorder %s73, %s74
    %p86 = scmp.eq.s32.totalorder %s22, 1
    %p87 = por %p85, %p86
    %p89 = scmp.ne.s32.totalorder %s74, %s88
    %p90 = scmp.eq.s32.totalorder %s22, 0
    %p91 = por %p89, %p90
    %s93 = sadd.s32 %s92, 1
    %p96 = scmp.eq.s32.totalorder %s16, 1
    %p97 = scmp.ne.s32.totalorder %s92, %s94
    %p98 = scmp.eq.s32.totalorder %s16, 0
    %p99 = por %p97, %p98
    %p100 = scmp.ne.s32.totalorder %s92, %s94
    %p101 = scmp.eq.s32.totalorder %s21, 1
    %p102 = por %p100, %p101
    %p103 = scmp.ne.s32.totalorder %s94, %s95
    %p104 = scmp.eq.s32.totalorder %s21, 0
    %p105 = por %p103, %p104
    %p106 = scmp.ne.s32.totalorder %s94, %s95
    %p107 = scmp.eq.s32.totalorder %s22, 1
    %p108 = por %p106, %p107
    %p110 = scmp.ne.s32.totalorder %s95, %s109
    %p111 = scmp.eq.s32.totalorder %s22, 0
    %p112 = por %p110, %p111
    %s114 = sadd.s32 %s113, 1
    %p117 = scmp.eq.s32.totalorder %s16, 1
    %p118 = scmp.ne.s32.totalorder %s113, %s115
    %p119 = scmp.eq.s32.totalorder %s16, 0
    %p120 = por %p118, %p119
    %p121 = scmp.ne.s32.totalorder %s113, %s115
    %p122 = scmp.eq.s32.totalorder %s21, 1
    %p123 = por %p121, %p122
    %p124 = scmp.ne.s32.totalorder %s115, %s116
    %p125 = scmp.eq.s32.totalorder %s21, 0
    %p126 = por %p124, %p125
    %p127 = scmp.ne.s32.totalorder %s115, %s116
    %p128 = scmp.eq.s32.totalorder %s22, 1
    %p129 = por %p127, %p128
    %p131 = scmp.ne.s32.totalorder %s116, %s130
    %p132 = scmp.eq.s32.totalorder %s22, 0
    %p133 = por %p131, %p132
    %s135 = sadd.s32 %s134, 1
    %p138 = scmp.eq.s32.totalorder %s16, 1
    %p139 = scmp.ne.s32.totalorder %s134, %s136
    %p140 = scmp.eq.s32.totalorder %s16, 0
    %p141 = por %p139, %p140
    %p142 = scmp.ne.s32.totalorder %s134, %s136
    %p143 = scmp.eq.s32.totalorder %s21, 1
    %p144 = por %p142, %p143
    %p145 = scmp.ne.s32.totalorder %s136, %s137
    %p146 = scmp.eq.s32.totalorder %s21, 0
    %p147 = por %p145, %p146
    %p148 = scmp.ne.s32.totalorder %s136, %s137
    %p149 = scmp.eq.s32.totalorder %s22, 1
    %p150 = por %p148, %p149
    %p152 = scmp.ne.s32.totalorder %s137, %s151
    %p153 = scmp.eq.s32.totalorder %s22, 0
    %p154 = por %p152, %p153
    %s156 = sadd.s32 %s155, 1
    %p159 = scmp.eq.s32.totalorder %s16, 1
    %p160 = scmp.ne.s32.totalorder %s155, %s157
    %p161 = scmp.eq.s32.totalorder %s16, 0
    %p162 = por %p160, %p161
    %p163 = scmp.ne.s32.totalorder %s155, %s157
    %p164 = scmp.eq.s32.totalorder %s21, 1
    %p165 = por %p163, %p164
    %p166 = scmp.ne.s32.totalorder %s157, %s158
    %p167 = scmp.eq.s32.totalorder %s21, 0
    %p168 = por %p166, %p167
    %p169 = scmp.ne.s32.totalorder %s157, %s158
    %p170 = scmp.eq.s32.totalorder %s22, 1
    %p171 = por %p169, %p170
    %p173 = scmp.ne.s32.totalorder %s158, %s172
    %p174 = scmp.eq.s32.totalorder %s22, 0
    %p175 = por %p173, %p174
    %s177 = sadd.s32 %s176, 1
    %p180 = scmp.eq.s32.totalorder %s16, 1
    %p181 = scmp.ne.s32.totalorder %s176, %s178
    %p182 = scmp.eq.s32.totalorder %s16, 0
    %p183 = por %p181, %p182
    %p184 = scmp.ne.s32.totalorder %s176, %s178
    %p185 = scmp.eq.s32.totalorder %s21, 1
    %p186 = por %p184, %p185
    %p187 = scmp.ne.s32.totalorder %s178, %s179
    %p188 = scmp.eq.s32.totalorder %s21, 0
    %p189 = por %p187, %p188
    %p190 = scmp.ne.s32.totalorder %s178, %s179
    %p191 = scmp.eq.s32.totalorder %s22, 1
    %p192 = por %p190, %p191
    %p194 = scmp.ne.s32.totalorder %s179, %s193
    %p195 = scmp.eq.s32.totalorder %s22, 0
    %p196 = por %p194, %p195
    %s198 = sadd.s32 %s197, 1
    %p201 = scmp.eq.s32.totalorder %s16, 1
    %p202 = scmp.ne.s32.totalorder %s197, %s199
    %p203 = scmp.eq.s32.totalorder %s16, 0
    %p204 = por %p202, %p203
    %p205 = scmp.ne.s32.totalorder %s197, %s199
    %p206 = scmp.eq.s32.totalorder %s21, 1
    %p207 = por %p205, %p206
    %p208 = scmp.ne.s32.totalorder %s199, %s200
    %p209 = scmp.eq.s32.totalorder %s21, 0
    %p210 = por %p208, %p209
    %p211 = scmp.ne.s32.totalorder %s199, %s200
    %p212 = scmp.eq.s32.totalorder %s22, 1
    %p213 = por %p211, %p212
    %p215 = scmp.ne.s32.totalorder %s200, %s214
    %p216 = scmp.eq.s32.totalorder %s22, 0
    %p217 = por %p215, %p216
    %s219 = sadd.s32 %s218, 1
    %p222 = scmp.eq.s32.totalorder %s16, 1
    %p223 = scmp.ne.s32.totalorder %s218, %s220
    %p224 = scmp.eq.s32.totalorder %s16, 0
    %p225 = por %p223, %p224
    %p226 = scmp.ne.s32.totalorder %s218, %s220
    %p227 = scmp.eq.s32.totalorder %s21, 1
    %p228 = por %p226, %p227
    %p229 = scmp.ne.s32.totalorder %s220, %s221
    %p230 = scmp.eq.s32.totalorder %s21, 0
    %p231 = por %p229, %p230
    %p232 = scmp.ne.s32.totalorder %s220, %s221
    %p233 = scmp.eq.s32.totalorder %s22, 1
    %p234 = por %p232, %p233
    %p236 = scmp.ne.s32.totalorder %s221, %s235
    %p237 = scmp.eq.s32.totalorder %s22, 0
    %p238 = por %p236, %p237
    %s239 = ssub.s32 %s16, %s23
    %p240 = scmp.eq.s32.totalorder %s239, 0
    %s242 = sadd.s32 %s241, 1
    %s243 = scalar_select %p240, %s241, %s242
    %p246 = pneg %p240
    %p247 = scmp.eq.s32.totalorder %s16, 1
    %p248 = por %p246, %p247
    %p249 = scmp.ne.s32.totalorder %s241, %s244
    %p250 = scmp.eq.s32.totalorder %s16, 0
    %p251 = por %p249, %p250
    %p252 = scmp.ne.s32.totalorder %s241, %s244
    %p253 = scmp.eq.s32.totalorder %s21, 1
    %p254 = por %p252, %p253
    %p255 = scmp.ne.s32.totalorder %s244, %s245
    %p256 = scmp.eq.s32.totalorder %s21, 0
    %p257 = por %p255, %p256
    %p258 = scmp.ne.s32.totalorder %s244, %s245
    %p259 = scmp.eq.s32.totalorder %s22, 1
    %p260 = por %p258, %p259
    %p262 = scmp.ne.s32.totalorder %s245, %s261
    %p263 = scmp.eq.s32.totalorder %s22, 0
    %p264 = por %p262, %p263
    %p265 = scmp.le.s32.totalorder 1, %s16
    %p266 = scmp.lt.s32.totalorder %s16, 3
    %p267 = pnand %p265, %p266
    %p268 = pneg %p267
    // Predicated region
    $region9: #{tpu_custom_call.1} parent=5 // pred_check
      _
    $region10: #{tpu_custom_call.1} parent=5 // pred_check_branch
      %270 = sbr.rel (%p267) target = $region12
    $region11: #{tpu_custom_call.1} parent=5 // pred_region
      %s271 = ssub.s32 %s16, 1
      // Predicated region
      $region13: #{tpu_custom_call.1} parent=11 // pred_check
        %p272 = pneg %p63
      $region14: #{tpu_custom_call.1} parent=11 // pred_check_branch
        %274 = sbr.rel (%p272) target = $region16
      $region15: #{tpu_custom_call.1} parent=11 // pred_region
        _
      $region16: #{tpu_custom_call.1} parent=11 // pred_fallthru
        _
      // Predicated region
      $region17: #{tpu_custom_call.1} parent=11 // pred_check
        %p275 = pneg %p84
      $region18: #{tpu_custom_call.1} parent=11 // pred_check_branch
        %277 = sbr.rel (%p275) target = $region20
      $region19: #{tpu_custom_call.1} parent=11 // pred_region
        _
      $region20: #{tpu_custom_call.1} parent=11 // pred_fallthru
        _
      // Predicated region
      $region21: #{tpu_custom_call.1} parent=11 // pred_check
        %p278 = pneg %p105
      $region22: #{tpu_custom_call.1} parent=11 // pred_check_branch
        %280 = sbr.rel (%p278) target = $region24
      $region23: #{tpu_custom_call.1} parent=11 // pred_region
        _
      $region24: #{tpu_custom_call.1} parent=11 // pred_fallthru
        _
      // Predicated region
      $region25: #{tpu_custom_call.1} parent=11 // pred_check
        %p281 = pneg %p126
      $region26: #{tpu_custom_call.1} parent=11 // pred_check_branch
        %283 = sbr.rel (%p281) target = $region28
      $region27: #{tpu_custom_call.1} parent=11 // pred_region
        _
      $region28: #{tpu_custom_call.1} parent=11 // pred_fallthru
        _
      // Predicated region
      $region29: #{tpu_custom_call.1} parent=11 // pred_check
        %p284 = pneg %p147
      $region30: #{tpu_custom_call.1} parent=11 // pred_check_branch
        %286 = sbr.rel (%p284) target = $region32
      $region31: #{tpu_custom_call.1} parent=11 // pred_region
        _
      $region32: #{tpu_custom_call.1} parent=11 // pred_fallthru
        _
      // Predicated region
      $region33: #{tpu_custom_call.1} parent=11 // pred_check
        %p287 = pneg %p168
      $region34: #{tpu_custom_call.1} parent=11 // pred_check_branch
        %289 = sbr.rel (%p287) target = $region36
      $region35: #{tpu_custom_call.1} parent=11 // pred_region
        _
      $region36: #{tpu_custom_call.1} parent=11 // pred_fallthru
        _
      // Predicated region
      $region37: #{tpu_custom_call.1} parent=11 // pred_check
        %p290 = pneg %p189
      $region38: #{tpu_custom_call.1} parent=11 // pred_check_branch
        %292 = sbr.rel (%p290) target = $region40
      $region39: #{tpu_custom_call.1} parent=11 // pred_region
        _
      $region40: #{tpu_custom_call.1} parent=11 // pred_fallthru
        _
      // Predicated region
      $region41: #{tpu_custom_call.1} parent=11 // pred_check
        %p293 = pneg %p210
      $region42: #{tpu_custom_call.1} parent=11 // pred_check_branch
        %295 = sbr.rel (%p293) target = $region44
      $region43: #{tpu_custom_call.1} parent=11 // pred_region
        _
      $region44: #{tpu_custom_call.1} parent=11 // pred_fallthru
        _
      // Predicated region
      $region45: #{tpu_custom_call.1} parent=11 // pred_check
        %p296 = pneg %p231
      $region46: #{tpu_custom_call.1} parent=11 // pred_check_branch
        %298 = sbr.rel (%p296) target = $region48
      $region47: #{tpu_custom_call.1} parent=11 // pred_region
        _
      $region48: #{tpu_custom_call.1} parent=11 // pred_fallthru
        _
    $region12: #{tpu_custom_call.1} parent=5 // pred_fallthru
      _
    %p299 = scmp.lt.s32.totalorder %s16, 2
    // Predicated region
    $region49: #{tpu_custom_call.1} parent=5 // pred_check
      %p300 = pneg %p299
    $region50: #{tpu_custom_call.1} parent=5 // pred_check_branch
      %302 = sbr.rel (%p300) target = $region52
    $region51: #{tpu_custom_call.1} parent=5 // pred_region
      // Predicated region
      $region53: #{tpu_custom_call.1} parent=51 // pred_check
        %p303 = pneg %p36
      $region54: #{tpu_custom_call.1} parent=51 // pred_check_branch
        %305 = sbr.rel (%p303) target = $region56
      $region55: #{tpu_custom_call.1} parent=51 // pred_region
        %p306 = scmp.lt.s32.totalorder %s16, 1
        %s307 = scalar_select %p306, %s16, 1
        %s308 = smul.addr %s307, 32
        %s309 = smul.addr %s308, 8
        %s310 = scalar_lea.vmem %s0, %s309
      $region56: #{tpu_custom_call.1} parent=51 // pred_fallthru
        _
    $region52: #{tpu_custom_call.1} parent=5 // pred_fallthru
      _
    %p311 = scmp.le.s32.totalorder 1, %s16
    %p312 = scmp.lt.s32.totalorder %s16, 3
    %p313 = pnand %p311, %p312
    %p314 = pneg %p313
    // Predicated region
    $region57: #{tpu_custom_call.1} parent=5 // pred_check
      _
    $region58: #{tpu_custom_call.1} parent=5 // pred_check_branch
      %316 = sbr.rel (%p313) target = $region60
    $region59: #{tpu_custom_call.1} parent=5 // pred_region
      %s317 = ssub.s32 %s16, 1
      %p318 = scmp.lt.s32.totalorder %s21, 1
      %s319 = scalar_select %p318, %s21, 1
      %s320 = smul.addr %s319, 32
      %s321 = smul.addr %s320, 8
      %s322 = scalar_lea.vmem %s0, %s321
      %p323 = pneg %p42
      %p324 = pneg %p39
      %p325 = pneg %p63
      %p326 = pneg %p60
      %p327 = pneg %p84
      %p328 = pneg %p81
      %p329 = pneg %p105
      %p330 = pneg %p102
      %p331 = pneg %p126
      %p332 = pneg %p123
      %p333 = pneg %p147
      %p334 = pneg %p144
      %p335 = pneg %p168
      %p336 = pneg %p165
      %p337 = pneg %p189
      %p338 = pneg %p186
      %p339 = pneg %p210
      %p340 = pneg %p207
      %p341 = pneg %p231
      %p342 = pneg %p228
      %p343 = pneg %p257
      %p344 = pneg %p254
      %p345 = scmp.lt.s32.totalorder %s21, 1
      %s346 = scalar_select %p345, %s21, 1
      %s347 = smul.addr %s346, 32
      %s348 = smul.addr %s347, 8
      %s349 = scalar_lea.vmem %s10, %s348
      %p350 = scmp.lt.s32.totalorder %s21, 1
      %s351 = scalar_select %p350, %s21, 1
      %s352 = smul.addr %s351, 32
      %s353 = smul.addr %s352, 8
      %s354 = scalar_lea.vmem %s0, %s353
      %p355 = scmp.lt.s32.totalorder %s21, 1
      %s356 = scalar_select %p355, %s21, 1
      %s357 = smul.addr %s356, 32
      %s358 = smul.addr %s357, 8
      %s359 = scalar_lea.vmem %s10, %s358
      %v360 = vld [vmem:[%s354] sm:$0xff]
      %v361 = vld [vmem:[%s354 + $0x8] sm:$0xff]
      %v362 = vld [vmem:[%s354 + $0x10] sm:$0xff]
      %v363 = vld [vmem:[%s354 + $0x18] sm:$0xff]
      %v364 = vld [vmem:[%s354 + $0x20] sm:$0xff]
      %v365 = vld [vmem:[%s354 + $0x28] sm:$0xff]
      %v366 = vld [vmem:[%s354 + $0x30] sm:$0xff]
      %v367 = vld [vmem:[%s354 + $0x38] sm:$0xff]
      %v368 = vld [vmem:[%s354 + $0x40] sm:$0xff]
      %v369 = vld [vmem:[%s354 + $0x48] sm:$0xff]
      %v370 = vld [vmem:[%s354 + $0x50] sm:$0xff]
      %v371 = vld [vmem:[%s354 + $0x58] sm:$0xff]
      %v372 = vld [vmem:[%s354 + $0x60] sm:$0xff]
      %v373 = vld [vmem:[%s354 + $0x68] sm:$0xff]
      %v374 = vld [vmem:[%s354 + $0x70] sm:$0xff]
      %v375 = vld [vmem:[%s354 + $0x78] sm:$0xff]
      %v376 = vld [vmem:[%s354 + $0x80] sm:$0xff]
      %v377 = vld [vmem:[%s354 + $0x88] sm:$0xff]
      %v378 = vld [vmem:[%s354 + $0x90] sm:$0xff]
      %v379 = vld [vmem:[%s354 + $0x98] sm:$0xff]
      %v380 = vld [vmem:[%s354 + $0xa0] sm:$0xff]
      %v381 = vld [vmem:[%s354 + $0xa8] sm:$0xff]
      %v382 = vld [vmem:[%s354 + $0xb0] sm:$0xff]
      %v383 = vld [vmem:[%s354 + $0xb8] sm:$0xff]
      %v384 = vld [vmem:[%s354 + $0xc0] sm:$0xff]
      %v385 = vld [vmem:[%s354 + $0xc8] sm:$0xff]
      %v386 = vld [vmem:[%s354 + $0xd0] sm:$0xff]
      %v387 = vld [vmem:[%s354 + $0xd8] sm:$0xff]
      %v388 = vld [vmem:[%s354 + $0xe0] sm:$0xff]
      %v389 = vld [vmem:[%s354 + $0xe8] sm:$0xff]
      %v390 = vld [vmem:[%s354 + $0xf0] sm:$0xff]
      %v391 = vld [vmem:[%s354 + $0xf8] sm:$0xff]
      %v392 = vld [vmem:[%s1] sm:$0xff]
      %vm393 = vcmask 64512
      %v395 = vsel %vm393, %v360, 0
      %v398 = vsel %vm393, %v361, 0
      %v401 = vsel %vm393, %v362, 0
      %v404 = vsel %vm393, %v363, 0
      %v407 = vsel %vm393, %v364, 0
      %v410 = vsel %vm393, %v365, 0
      %v413 = vsel %vm393, %v366, 0
      %v416 = vsel %vm393, %v367, 0
      %v419 = vsel %vm393, %v368, 0
      %v422 = vsel %vm393, %v369, 0
      %v425 = vsel %vm393, %v370, 0
      %v428 = vsel %vm393, %v371, 0
      %v431 = vsel %vm393, %v372, 0
      %v434 = vsel %vm393, %v373, 0
      %v437 = vsel %vm393, %v374, 0
      %v440 = vsel %vm393, %v375, 0
      %v443 = vsel %vm393, %v376, 0
      %v446 = vsel %vm393, %v377, 0
      %v449 = vsel %vm393, %v378, 0
      %v452 = vsel %vm393, %v379, 0
      %v455 = vsel %vm393, %v380, 0
      %v458 = vsel %vm393, %v381, 0
      %v461 = vsel %vm393, %v382, 0
      %v464 = vsel %vm393, %v383, 0
      %v467 = vsel %vm393, %v384, 0
      %v470 = vsel %vm393, %v385, 0
      %v473 = vsel %vm393, %v386, 0
      %v476 = vsel %vm393, %v387, 0
      %v479 = vsel %vm393, %v388, 0
      %v482 = vsel %vm393, %v389, 0
      %v485 = vsel %vm393, %v390, 0
      %v488 = vsel %vm393, %v391, 0
      %490 = vmatprep.subr.mxu0 0.0
      %491 = vmatpush1.msra.mxu0 %v392
      %492 = vmatprep.subr.mxu0 0.0
      %493 = vmatpush1.msra.mxu0 0.0
      %494 = vmatprep.subr.mxu0 0.0
      %495 = vmatpush1.msra.mxu0 0.0
      %496 = vmatprep.subr.mxu0 0.0
      %497 = vmatpush1.msra.mxu0 0.0
      %498 = vmatprep.subr.mxu0 0.0
      %499 = vmatpush1.msra.mxu0 0.0
      %500 = vmatprep.subr.mxu0 0.0
      %501 = vmatpush1.msra.mxu0 0.0
      %502 = vmatprep.subr.mxu0 0.0
      %503 = vmatpush1.msra.mxu0 0.0
      %504 = vmatprep.subr.mxu0 0.0
      %505 = vmatpush1.msra.mxu0 0.0
      %506 = vmatprep.subr.mxu0 0.0
      %507 = vmatpush1.msra.mxu0 0.0
      %508 = vmatprep.subr.mxu0 0.0
      %509 = vmatpush1.msra.mxu0 0.0
      %510 = vmatprep.subr.mxu0 0.0
      %511 = vmatpush1.msra.mxu0 0.0
      %512 = vmatprep.subr.mxu0 0.0
      %513 = vmatpush1.msra.mxu0 0.0
      %514 = vmatprep.subr.mxu0 0.0
      %515 = vmatpush1.msra.mxu0 0.0
      %516 = vmatprep.subr.mxu0 0.0
      %517 = vmatpush1.msra.mxu0 0.0
      %518 = vmatprep.subr.mxu0 0.0
      %519 = vmatpush1.msra.mxu0 0.0
      %520 = vmatprep.subr.mxu0 0.0
      %521 = vmatpush1.msra.mxu0 0.0
      %522 = vmatprep.subr.mxu0 0.0
      %523 = vmatpush1.msra.mxu0 0.0
      %524 = vmatprep.subr.mxu0 0.0
      %525 = vmatpush1.msra.mxu0 0.0
      %526 = vmatprep.subr.mxu0 0.0
      %527 = vmatpush1.msra.mxu0 0.0
      %528 = vmatprep.subr.mxu0 0.0
      %529 = vmatpush1.msra.mxu0 0.0
      %530 = vmatprep.subr.mxu0 0.0
      %531 = vmatpush1.msra.mxu0 0.0
      %532 = vmatprep.subr.mxu0 0.0
      %533 = vmatpush1.msra.mxu0 0.0
      %534 = vmatprep.subr.mxu0 0.0
      %535 = vmatpush1.msra.mxu0 0.0
      %536 = vmatprep.subr.mxu0 0.0
      %537 = vmatpush1.msra.mxu0 0.0
      %538 = vmatprep.subr.mxu0 0.0
      %539 = vmatpush1.msra.mxu0 0.0
      %540 = vmatprep.subr.mxu0 0.0
      %541 = vmatpush1.msra.mxu0 0.0
      %542 = vmatprep.subr.mxu0 0.0
      %543 = vmatpush1.msra.mxu0 0.0
      %544 = vmatprep.subr.mxu0 0.0
      %545 = vmatpush1.msra.mxu0 0.0
      %546 = vmatprep.subr.mxu0 0.0
      %547 = vmatpush1.msra.mxu0 0.0
      %548 = vmatprep.subr.mxu0 0.0
      %549 = vmatpush1.msra.mxu0 0.0
      %550 = vmatprep.subr.mxu0 0.0
      %551 = vmatpush1.msra.mxu0 0.0
      %552 = vmatprep.subr.mxu0 0.0
      %553 = vmatpush1.msra.mxu0 0.0
      %554 = vmatprep.mubr.f32.mxu0 0.0
      %555 = vmatmul.mubr.f32.gmra.mrb[0].mxu0 %v395
      %v556 = vpop.f32.mrb[0].mxu0
      %v557 = vadd.f32 0.0, %v556
      %v558 = vpop.f32.mrb[0].mxu0
      %559 = vmatprep.mubr.f32.mxu0 0.0
      %560 = vmatmul.mubr.f32.gmra.mrb[0].mxu0 %v398
      %v561 = vpop.f32.mrb[0].mxu0
      %v562 = vadd.f32 0.0, %v561
      %v563 = vpop.f32.mrb[0].mxu0
      %564 = vmatprep.mubr.f32.mxu0 0.0
      %565 = vmatmul.mubr.f32.gmra.mrb[0].mxu0 %v401
      %v566 = vpop.f32.mrb[0].mxu0
      %v567 = vadd.f32 0.0, %v566
      %v568 = vpop.f32.mrb[0].mxu0
      %569 = vmatprep.mubr.f32.mxu0 0.0
      %570 = vmatmul.mubr.f32.gmra.mrb[0].mxu0 %v404
      %v571 = vpop.f32.mrb[0].mxu0
      %v572 = vadd.f32 0.0, %v571
      %v573 = vpop.f32.mrb[0].mxu0
      %574 = vmatprep.mubr.f32.mxu0 0.0
      %575 = vmatmul.mubr.f32.gmra.mrb[0].mxu0 %v407
      %v576 = vpop.f32.mrb[0].mxu0
      %v577 = vadd.f32 0.0, %v576
      %v578 = vpop.f32.mrb[0].mxu0
      %579 = vmatprep.mubr.f32.mxu0 0.0
      %580 = vmatmul.mubr.f32.gmra.mrb[0].mxu0 %v410
      %v581 = vpop.f32.mrb[0].mxu0
      %v582 = vadd.f32 0.0, %v581
      %v583 = vpop.f32.mrb[0].mxu0
      %584 = vmatprep.mubr.f32.mxu0 0.0
      %585 = vmatmul.mubr.f32.gmra.mrb[0].mxu0 %v413
      %v586 = vpop.f32.mrb[0].mxu0
      %v587 = vadd.f32 0.0, %v586
      %v588 = vpop.f32.mrb[0].mxu0
      %589 = vmatprep.mubr.f32.mxu0 0.0
      %590 = vmatmul.mubr.f32.gmra.mrb[0].mxu0 %v416
      %v591 = vpop.f32.mrb[0].mxu0
      %v592 = vadd.f32 0.0, %v591
      %v593 = vpop.f32.mrb[0].mxu0
      %594 = vmatprep.mubr.f32.mxu0 0.0
      %595 = vmatmul.mubr.f32.gmra.mrb[0].mxu0 %v419
      %v596 = vpop.f32.mrb[0].mxu0
      %v597 = vadd.f32 0.0, %v596
      %v598 = vpop.f32.mrb[0].mxu0
      %599 = vmatprep.mubr.f32.mxu0 0.0
      %600 = vmatmul.mubr.f32.gmra.mrb[0].mxu0 %v422
      %v601 = vpop.f32.mrb[0].mxu0
      %v602 = vadd.f32 0.0, %v601
      %v603 = vpop.f32.mrb[0].mxu0
      %604 = vmatprep.mubr.f32.mxu0 0.0
      %605 = vmatmul.mubr.f32.gmra.mrb[0].mxu0 %v425
      %v606 = vpop.f32.mrb[0].mxu0
      %v607 = vadd.f32 0.0, %v606
      %v608 = vpop.f32.mrb[0].mxu0
      %609 = vmatprep.mubr.f32.mxu0 0.0
      %610 = vmatmul.mubr.f32.gmra.mrb[0].mxu0 %v428
      %v611 = vpop.f32.mrb[0].mxu0
      %v612 = vadd.f32 0.0, %v611
      %v613 = vpop.f32.mrb[0].mxu0
      %614 = vmatprep.mubr.f32.mxu0 0.0
      %615 = vmatmul.mubr.f32.gmra.mrb[0].mxu0 %v431
      %v616 = vpop.f32.mrb[0].mxu0
      %v617 = vadd.f32 0.0, %v616
      %v618 = vpop.f32.mrb[0].mxu0
      %619 = vmatprep.mubr.f32.mxu0 0.0
      %620 = vmatmul.mubr.f32.gmra.mrb[0].mxu0 %v434
      %v621 = vpop.f32.mrb[0].mxu0
      %v622 = vadd.f32 0.0, %v621
      %v623 = vpop.f32.mrb[0].mxu0
      %624 = vmatprep.mubr.f32.mxu0 0.0
      %625 = vmatmul.mubr.f32.gmra.mrb[0].mxu0 %v437
      %v626 = vpop.f32.mrb[0].mxu0
      %v627 = vadd.f32 0.0, %v626
      %v628 = vpop.f32.mrb[0].mxu0
      %629 = vmatprep.mubr.f32.mxu0 0.0
      %630 = vmatmul.mubr.f32.gmra.mrb[0].mxu0 %v440
      %v631 = vpop.f32.mrb[0].mxu0
      %v632 = vadd.f32 0.0, %v631
      %v633 = vpop.f32.mrb[0].mxu0
      %634 = vmatprep.mubr.f32.mxu0 0.0
      %635 = vmatmul.mubr.f32.gmra.mrb[0].mxu0 %v443
      %v636 = vpop.f32.mrb[0].mxu0
      %v637 = vadd.f32 0.0, %v636
      %v638 = vpop.f32.mrb[0].mxu0
      %639 = vmatprep.mubr.f32.mxu0 0.0
      %640 = vmatmul.mubr.f32.gmra.mrb[0].mxu0 %v446
      %v641 = vpop.f32.mrb[0].mxu0
      %v642 = vadd.f32 0.0, %v641
      %v643 = vpop.f32.mrb[0].mxu0
      %644 = vmatprep.mubr.f32.mxu0 0.0
      %645 = vmatmul.mubr.f32.gmra.mrb[0].mxu0 %v449
      %v646 = vpop.f32.mrb[0].mxu0
      %v647 = vadd.f32 0.0, %v646
      %v648 = vpop.f32.mrb[0].mxu0
      %649 = vmatprep.mubr.f32.mxu0 0.0
      %650 = vmatmul.mubr.f32.gmra.mrb[0].mxu0 %v452
      %v651 = vpop.f32.mrb[0].mxu0
      %v652 = vadd.f32 0.0, %v651
      %v653 = vpop.f32.mrb[0].mxu0
      %654 = vmatprep.mubr.f32.mxu0 0.0
      %655 = vmatmul.mubr.f32.gmra.mrb[0].mxu0 %v455
      %v656 = vpop.f32.mrb[0].mxu0
      %v657 = vadd.f32 0.0, %v656
      %v658 = vpop.f32.mrb[0].mxu0
      %659 = vmatprep.mubr.f32.mxu0 0.0
      %660 = vmatmul.mubr.f32.gmra.mrb[0].mxu0 %v458
      %v661 = vpop.f32.mrb[0].mxu0
      %v662 = vadd.f32 0.0, %v661
      %v663 = vpop.f32.mrb[0].mxu0
      %664 = vmatprep.mubr.f32.mxu0 0.0
      %665 = vmatmul.mubr.f32.gmra.mrb[0].mxu0 %v461
      %v666 = vpop.f32.mrb[0].mxu0
      %v667 = vadd.f32 0.0, %v666
      %v668 = vpop.f32.mrb[0].mxu0
      %669 = vmatprep.mubr.f32.mxu0 0.0
      %670 = vmatmul.mubr.f32.gmra.mrb[0].mxu0 %v464
      %v671 = vpop.f32.mrb[0].mxu0
      %v672 = vadd.f32 0.0, %v671
      %v673 = vpop.f32.mrb[0].mxu0
      %674 = vmatprep.mubr.f32.mxu0 0.0
      %675 = vmatmul.mubr.f32.gmra.mrb[0].mxu0 %v467
      %v676 = vpop.f32.mrb[0].mxu0
      %v677 = vadd.f32 0.0, %v676
      %v678 = vpop.f32.mrb[0].mxu0
      %679 = vmatprep.mubr.f32.mxu0 0.0
      %680 = vmatmul.mubr.f32.gmra.mrb[0].mxu0 %v470
      %v681 = vpop.f32.mrb[0].mxu0
      %v682 = vadd.f32 0.0, %v681
      %v683 = vpop.f32.mrb[0].mxu0
      %684 = vmatprep.mubr.f32.mxu0 0.0
      %685 = vmatmul.mubr.f32.gmra.mrb[0].mxu0 %v473
      %v686 = vpop.f32.mrb[0].mxu0
      %v687 = vadd.f32 0.0, %v686
      %v688 = vpop.f32.mrb[0].mxu0
      %689 = vmatprep.mubr.f32.mxu0 0.0
      %690 = vmatmul.mubr.f32.gmra.mrb[0].mxu0 %v476
      %v691 = vpop.f32.mrb[0].mxu0
      %v692 = vadd.f32 0.0, %v691
      %v693 = vpop.f32.mrb[0].mxu0
      %694 = vmatprep.mubr.f32.mxu0 0.0
      %695 = vmatmul.mubr.f32.gmra.mrb[0].mxu0 %v479
      %v696 = vpop.f32.mrb[0].mxu0
      %v697 = vadd.f32 0.0, %v696
      %v698 = vpop.f32.mrb[0].mxu0
      %699 = vmatprep.mubr.f32.mxu0 0.0
      %700 = vmatmul.mubr.f32.gmra.mrb[0].mxu0 %v482
      %v701 = vpop.f32.mrb[0].mxu0
      %v702 = vadd.f32 0.0, %v701
      %v703 = vpop.f32.mrb[0].mxu0
      %704 = vmatprep.mubr.f32.mxu0 0.0
      %705 = vmatmul.mubr.f32.gmra.mrb[0].mxu0 %v485
      %v706 = vpop.f32.mrb[0].mxu0
      %v707 = vadd.f32 0.0, %v706
      %v708 = vpop.f32.mrb[0].mxu0
      %709 = vmatprep.mubr.f32.mxu0 0.0
      %710 = vmatmul.mubr.f32.gmra.mrb[0].mxu0 %v488
      %v711 = vpop.f32.mrb[0].mxu0
      %v712 = vadd.f32 0.0, %v711
      %v713 = vpop.f32.mrb[0].mxu0
      %714 = vdwg.mxu0
      %v715 = vld [vmem:[%s2] sm:$0x1]
      %v717 = vlaneseq
      %v718 = vshrl.u32 %v717, 7
      %v719 = vsub.s32 0, %v718
      %v720 = vrot.slane %v715, %v719
      %v722 = vmul.f32 %v557, %v720
      %v723 = vmul.f32 %v562, %v720
      %v724 = vmul.f32 %v567, %v720
      %v725 = vmul.f32 %v572, %v720
      %v726 = vmul.f32 %v577, %v720
      %v727 = vmul.f32 %v582, %v720
      %v728 = vmul.f32 %v587, %v720
      %v729 = vmul.f32 %v592, %v720
      %v730 = vmul.f32 %v597, %v720
      %v731 = vmul.f32 %v602, %v720
      %v732 = vmul.f32 %v607, %v720
      %v733 = vmul.f32 %v612, %v720
      %v734 = vmul.f32 %v617, %v720
      %v735 = vmul.f32 %v622, %v720
      %v736 = vmul.f32 %v627, %v720
      %v737 = vmul.f32 %v632, %v720
      %v738 = vmul.f32 %v637, %v720
      %v739 = vmul.f32 %v642, %v720
      %v740 = vmul.f32 %v647, %v720
      %v741 = vmul.f32 %v652, %v720
      %v742 = vmul.f32 %v657, %v720
      %v743 = vmul.f32 %v662, %v720
      %v744 = vmul.f32 %v667, %v720
      %v745 = vmul.f32 %v672, %v720
      %v746 = vmul.f32 %v677, %v720
      %v747 = vmul.f32 %v682, %v720
      %v748 = vmul.f32 %v687, %v720
      %v749 = vmul.f32 %v692, %v720
      %v750 = vmul.f32 %v697, %v720
      %v751 = vmul.f32 %v702, %v720
      %v752 = vmul.f32 %v707, %v720
      %v753 = vmul.f32 %v712, %v720
      %v754 = vld [vmem:[%s3] sm:$0x1]
      %v756 = vlaneseq
      %v757 = vshrl.u32 %v756, 7
      %v758 = vsub.s32 0, %v757
      %v759 = vrot.slane %v754, %v758
      %v761 = vadd.f32 %v722, %v759
      %v762 = vadd.f32 %v723, %v759
      %v763 = vadd.f32 %v724, %v759
      %v764 = vadd.f32 %v725, %v759
      %v765 = vadd.f32 %v726, %v759
      %v766 = vadd.f32 %v727, %v759
      %v767 = vadd.f32 %v728, %v759
      %v768 = vadd.f32 %v729, %v759
      %v769 = vadd.f32 %v730, %v759
      %v770 = vadd.f32 %v731, %v759
      %v771 = vadd.f32 %v732, %v759
      %v772 = vadd.f32 %v733, %v759
      %v773 = vadd.f32 %v734, %v759
      %v774 = vadd.f32 %v735, %v759
      %v775 = vadd.f32 %v736, %v759
      %v776 = vadd.f32 %v737, %v759
      %v777 = vadd.f32 %v738, %v759
      %v778 = vadd.f32 %v739, %v759
      %v779 = vadd.f32 %v740, %v759
      %v780 = vadd.f32 %v741, %v759
      %v781 = vadd.f32 %v742, %v759
      %v782 = vadd.f32 %v743, %v759
      %v783 = vadd.f32 %v744, %v759
      %v784 = vadd.f32 %v745, %v759
      %v785 = vadd.f32 %v746, %v759
      %v786 = vadd.f32 %v747, %v759
      %v787 = vadd.f32 %v748, %v759
      %v788 = vadd.f32 %v749, %v759
      %v789 = vadd.f32 %v750, %v759
      %v790 = vadd.f32 %v751, %v759
      %v791 = vadd.f32 %v752, %v759
      %v792 = vadd.f32 %v753, %v759
      %v793 = vmax.f32 %v761, 0.0
      %v794 = vmax.f32 %v762, 0.0
      %v795 = vmax.f32 %v763, 0.0
      %v796 = vmax.f32 %v764, 0.0
      %v797 = vmax.f32 %v765, 0.0
      %v798 = vmax.f32 %v766, 0.0
      %v799 = vmax.f32 %v767, 0.0
      %v800 = vmax.f32 %v768, 0.0
      %v801 = vmax.f32 %v769, 0.0
      %v802 = vmax.f32 %v770, 0.0
      %v803 = vmax.f32 %v771, 0.0
      %v804 = vmax.f32 %v772, 0.0
      %v805 = vmax.f32 %v773, 0.0
      %v806 = vmax.f32 %v774, 0.0
      %v807 = vmax.f32 %v775, 0.0
      %v808 = vmax.f32 %v776, 0.0
      %v809 = vmax.f32 %v777, 0.0
      %v810 = vmax.f32 %v778, 0.0
      %v811 = vmax.f32 %v779, 0.0
      %v812 = vmax.f32 %v780, 0.0
      %v813 = vmax.f32 %v781, 0.0
      %v814 = vmax.f32 %v782, 0.0
      %v815 = vmax.f32 %v783, 0.0
      %v816 = vmax.f32 %v784, 0.0
      %v817 = vmax.f32 %v785, 0.0
      %v818 = vmax.f32 %v786, 0.0
      %v819 = vmax.f32 %v787, 0.0
      %v820 = vmax.f32 %v788, 0.0
      %v821 = vmax.f32 %v789, 0.0
      %v822 = vmax.f32 %v790, 0.0
      %v823 = vmax.f32 %v791, 0.0
      %v824 = vmax.f32 %v792, 0.0
      %v825 = vmin.f32 %v793, 6.0
      %v826 = vmin.f32 %v794, 6.0
      %v827 = vmin.f32 %v795, 6.0
      %v828 = vmin.f32 %v796, 6.0
      %v829 = vmin.f32 %v797, 6.0
      %v830 = vmin.f32 %v798, 6.0
      %v831 = vmin.f32 %v799, 6.0
      %v832 = vmin.f32 %v800, 6.0
      %v833 = vmin.f32 %v801, 6.0
      %v834 = vmin.f32 %v802, 6.0
      %v835 = vmin.f32 %v803, 6.0
      %v836 = vmin.f32 %v804, 6.0
      %v837 = vmin.f32 %v805, 6.0
      %v838 = vmin.f32 %v806, 6.0
      %v839 = vmin.f32 %v807, 6.0
      %v840 = vmin.f32 %v808, 6.0
      %v841 = vmin.f32 %v809, 6.0
      %v842 = vmin.f32 %v810, 6.0
      %v843 = vmin.f32 %v811, 6.0
      %v844 = vmin.f32 %v812, 6.0
      %v845 = vmin.f32 %v813, 6.0
      %v846 = vmin.f32 %v814, 6.0
      %v847 = vmin.f32 %v815, 6.0
      %v848 = vmin.f32 %v816, 6.0
      %v849 = vmin.f32 %v817, 6.0
      %v850 = vmin.f32 %v818, 6.0
      %v851 = vmin.f32 %v819, 6.0
      %v852 = vmin.f32 %v820, 6.0
      %v853 = vmin.f32 %v821, 6.0
      %v854 = vmin.f32 %v822, 6.0
      %v855 = vmin.f32 %v823, 6.0
      %v856 = vmin.f32 %v824, 6.0
      %vm857 = vcmask 261120
      %858 = vst.msk [vmem:[#allocation2] sm:$0xff] %vm857, 0.0
      %859 = vst.msk [vmem:[#allocation2 + $0x8] sm:$0xff] %vm857, 0.0
      %vm860 = vcmask 254976
      %861 = vst.msk [vmem:[#allocation2 + $0x10] sm:$0x3] %vm860, 0.0
      %862 = vst.msk [vmem:[#allocation2 + $0x18] sm:$0xff] %vm857, 0.0
      %863 = vst.msk [vmem:[#allocation2 + $0x20] sm:$0xff] %vm857, 0.0
      %864 = vst.msk [vmem:[#allocation2 + $0x28] sm:$0x3] %vm860, 0.0
      %865 = vst.msk [vmem:[#allocation2 + $0x30] sm:$0xff] %vm857, 0.0
      %866 = vst.msk [vmem:[#allocation2 + $0x38] sm:$0xff] %vm857, 0.0
      %867 = vst.msk [vmem:[#allocation2 + $0x40] sm:$0x3] %vm860, 0.0
      %868 = vst.msk [vmem:[#allocation2 + $0x48] sm:$0xff] %vm857, 0.0
      %869 = vst.msk [vmem:[#allocation2 + $0x50] sm:$0xff] %vm857, 0.0
      %870 = vst.msk [vmem:[#allocation2 + $0x58] sm:$0x3] %vm860, 0.0
      %871 = vst.msk [vmem:[#allocation2 + $0x60] sm:$0xff] %vm857, 0.0
      %872 = vst.msk [vmem:[#allocation2 + $0x68] sm:$0xff] %vm857, 0.0
      %873 = vst.msk [vmem:[#allocation2 + $0x70] sm:$0x3] %vm860, 0.0
      %874 = vst.msk [vmem:[#allocation2 + $0x78] sm:$0xff] %vm857, 0.0
      %875 = vst.msk [vmem:[#allocation2 + $0x80] sm:$0xff] %vm857, 0.0
      %876 = vst.msk [vmem:[#allocation2 + $0x88] sm:$0x3] %vm860, 0.0
      %877 = vst.msk [vmem:[#allocation2 + $0x90] sm:$0xff] %vm857, 0.0
      %878 = vst.msk [vmem:[#allocation2 + $0x98] sm:$0xff] %vm857, 0.0
      %879 = vst.msk [vmem:[#allocation2 + $0xa0] sm:$0x3] %vm860, 0.0
      %880 = vst.msk [vmem:[#allocation2 + $0xa8] sm:$0xff] %vm857, 0.0
      %881 = vst.msk [vmem:[#allocation2 + $0xb0] sm:$0xff] %vm857, 0.0
      %882 = vst.msk [vmem:[#allocation2 + $0xb8] sm:$0x3] %vm860, 0.0
      %883 = vst.msk [vmem:[#allocation2 + $0xc0] sm:$0xff] %vm857, 0.0
      %884 = vst.msk [vmem:[#allocation2 + $0xc8] sm:$0xff] %vm857, 0.0
      %885 = vst.msk [vmem:[#allocation2 + $0xd0] sm:$0x3] %vm860, 0.0
      %886 = vst.msk [vmem:[#allocation2 + $0xd8] sm:$0xff] %vm857, 0.0
      %887 = vst.msk [vmem:[#allocation2 + $0xe0] sm:$0xff] %vm857, 0.0
      %888 = vst.msk [vmem:[#allocation2 + $0xe8] sm:$0x3] %vm860, 0.0
      %889 = vst.msk [vmem:[#allocation2 + $0xf0] sm:$0xff] %vm857, 0.0
      %890 = vst.msk [vmem:[#allocation2 + $0xf8] sm:$0xff] %vm857, 0.0
      %891 = vst.msk [vmem:[#allocation2 + $0x100] sm:$0x3] %vm860, 0.0
      %892 = vst.msk [vmem:[#allocation2 + $0x108] sm:$0xff] %vm857, 0.0
      %893 = vst.msk [vmem:[#allocation2 + $0x110] sm:$0xff] %vm857, 0.0
      %894 = vst.msk [vmem:[#allocation2 + $0x118] sm:$0x3] %vm860, 0.0
      %895 = vst.msk [vmem:[#allocation2 + $0x120] sm:$0xff] %vm857, 0.0
      %896 = vst.msk [vmem:[#allocation2 + $0x128] sm:$0xff] %vm857, 0.0
      %897 = vst.msk [vmem:[#allocation2 + $0x130] sm:$0x3] %vm860, 0.0
      %898 = vst.msk [vmem:[#allocation2 + $0x138] sm:$0xff] %vm857, 0.0
      %899 = vst.msk [vmem:[#allocation2 + $0x140] sm:$0xff] %vm857, 0.0
      %900 = vst.msk [vmem:[#allocation2 + $0x148] sm:$0x3] %vm860, 0.0
      %901 = vst.msk [vmem:[#allocation2 + $0x150] sm:$0xff] %vm857, 0.0
      %902 = vst.msk [vmem:[#allocation2 + $0x158] sm:$0xff] %vm857, 0.0
      %903 = vst.msk [vmem:[#allocation2 + $0x160] sm:$0x3] %vm860, 0.0
      %904 = vst.msk [vmem:[#allocation2 + $0x168] sm:$0xff] %vm857, 0.0
      %905 = vst.msk [vmem:[#allocation2 + $0x170] sm:$0xff] %vm857, 0.0
      %906 = vst.msk [vmem:[#allocation2 + $0x178] sm:$0x3] %vm860, 0.0
      %907 = vst.msk [vmem:[#allocation2 + $0x180] sm:$0xff] %vm857, 0.0
      %908 = vst.msk [vmem:[#allocation2 + $0x188] sm:$0xff] %vm857, 0.0
      %909 = vst.msk [vmem:[#allocation2 + $0x190] sm:$0x3] %vm860, 0.0
      %910 = vst.msk [vmem:[#allocation2 + $0x198] sm:$0xff] %vm857, 0.0
      %911 = vst.msk [vmem:[#allocation2 + $0x1a0] sm:$0xff] %vm857, 0.0
      %912 = vst.msk [vmem:[#allocation2 + $0x1a8] sm:$0x3] %vm860, 0.0
      %s913 = scalar_lea.vmem [#allocation2], 24
      %914 = vst.msk [vmem:[%s913 + $0x1] sm:$0xff] %vm857, %v825
      %915 = vst.msk [vmem:[%s913 + $0x9] sm:$0xff] %vm857, %v826
      %916 = vst.msk [vmem:[%s913 + $0x19] sm:$0xff] %vm857, %v827
      %917 = vst.msk [vmem:[%s913 + $0x21] sm:$0xff] %vm857, %v828
      %918 = vst.msk [vmem:[%s913 + $0x31] sm:$0xff] %vm857, %v829
      %919 = vst.msk [vmem:[%s913 + $0x39] sm:$0xff] %vm857, %v830
      %920 = vst.msk [vmem:[%s913 + $0x49] sm:$0xff] %vm857, %v831
      %921 = vst.msk [vmem:[%s913 + $0x51] sm:$0xff] %vm857, %v832
      %922 = vst.msk [vmem:[%s913 + $0x61] sm:$0xff] %vm857, %v833
      %923 = vst.msk [vmem:[%s913 + $0x69] sm:$0xff] %vm857, %v834
      %924 = vst.msk [vmem:[%s913 + $0x79] sm:$0xff] %vm857, %v835
      %925 = vst.msk [vmem:[%s913 + $0x81] sm:$0xff] %vm857, %v836
      %926 = vst.msk [vmem:[%s913 + $0x91] sm:$0xff] %vm857, %v837
      %927 = vst.msk [vmem:[%s913 + $0x99] sm:$0xff] %vm857, %v838
      %928 = vst.msk [vmem:[%s913 + $0xa9] sm:$0xff] %vm857, %v839
      %929 = vst.msk [vmem:[%s913 + $0xb1] sm:$0xff] %vm857, %v840
      %930 = vst.msk [vmem:[%s913 + $0xc1] sm:$0xff] %vm857, %v841
      %931 = vst.msk [vmem:[%s913 + $0xc9] sm:$0xff] %vm857, %v842
      %932 = vst.msk [vmem:[%s913 + $0xd9] sm:$0xff] %vm857, %v843
      %933 = vst.msk [vmem:[%s913 + $0xe1] sm:$0xff] %vm857, %v844
      %934 = vst.msk [vmem:[%s913 + $0xf1] sm:$0xff] %vm857, %v845
      %935 = vst.msk [vmem:[%s913 + $0xf9] sm:$0xff] %vm857, %v846
      %936 = vst.msk [vmem:[%s913 + $0x109] sm:$0xff] %vm857, %v847
      %937 = vst.msk [vmem:[%s913 + $0x111] sm:$0xff] %vm857, %v848
      %938 = vst.msk [vmem:[%s913 + $0x121] sm:$0xff] %vm857, %v849
      %939 = vst.msk [vmem:[%s913 + $0x129] sm:$0xff] %vm857, %v850
      %940 = vst.msk [vmem:[%s913 + $0x139] sm:$0xff] %vm857, %v851
      %941 = vst.msk [vmem:[%s913 + $0x141] sm:$0xff] %vm857, %v852
      %942 = vst.msk [vmem:[%s913 + $0x151] sm:$0xff] %vm857, %v853
      %943 = vst.msk [vmem:[%s913 + $0x159] sm:$0xff] %vm857, %v854
      %944 = vst.msk [vmem:[%s913 + $0x169] sm:$0xff] %vm857, %v855
      %945 = vst.msk [vmem:[%s913 + $0x171] sm:$0xff] %vm857, %v856
      %v946 = vld [vmem:[#allocation2] sm:$0xff]
      %v947 = vld [vmem:[#allocation2 + $0x8] sm:$0xff]
      %v948 = vld [vmem:[#allocation2 + $0x18] sm:$0xff]
      %v949 = vld [vmem:[#allocation2 + $0x20] sm:$0xff]
      %v950 = vld [vmem:[#allocation2 + $0x30] sm:$0xff]
      %v951 = vld [vmem:[#allocation2 + $0x38] sm:$0xff]
      %v952 = vld [vmem:[#allocation2 + $0x48] sm:$0xff]
      %v953 = vld [vmem:[#allocation2 + $0x50] sm:$0xff]
      %v954 = vld [vmem:[#allocation2 + $0x60] sm:$0xff]
      %v955 = vld [vmem:[#allocation2 + $0x68] sm:$0xff]
      %v956 = vld [vmem:[#allocation2 + $0x78] sm:$0xff]
      %v957 = vld [vmem:[#allocation2 + $0x80] sm:$0xff]
      %v958 = vld [vmem:[#allocation2 + $0x90] sm:$0xff]
      %v959 = vld [vmem:[#allocation2 + $0x98] sm:$0xff]
      %v960 = vld [vmem:[#allocation2 + $0xa8] sm:$0xff]
      %v961 = vld [vmem:[#allocation2 + $0xb0] sm:$0xff]
      %v962 = vld [vmem:[#allocation2 + $0xc0] sm:$0xff]
      %v963 = vld [vmem:[#allocation2 + $0xc8] sm:$0xff]
      %v964 = vld [vmem:[#allocation2 + $0xd8] sm:$0xff]
      %v965 = vld [vmem:[#allocation2 + $0xe0] sm:$0xff]
      %v966 = vld [vmem:[#allocation2 + $0xf0] sm:$0xff]
      %v967 = vld [vmem:[#allocation2 + $0xf8] sm:$0xff]
      %v968 = vld [vmem:[#allocation2 + $0x108] sm:$0xff]
      %v969 = vld [vmem:[#allocation2 + $0x110] sm:$0xff]
      %v970 = vld [vmem:[#allocation2 + $0x120] sm:$0xff]
      %v971 = vld [vmem:[#allocation2 + $0x128] sm:$0xff]
      %v972 = vld [vmem:[#allocation2 + $0x138] sm:$0xff]
      %v973 = vld [vmem:[#allocation2 + $0x140] sm:$0xff]
      %v974 = vld [vmem:[#allocation2 + $0x150] sm:$0xff]
      %v975 = vld [vmem:[#allocation2 + $0x158] sm:$0xff]
      %v976 = vld [vmem:[#allocation2 + $0x168] sm:$0xff]
      %v977 = vld [vmem:[#allocation2 + $0x170] sm:$0xff]
      %v978 = vld [vmem:[%s4] sm:$0x1]
      %v980 = vlaneseq
      %v981 = vshrl.u32 %v980, 7
      %v982 = vsub.s32 0, %v981
      %v983 = vrot.slane %v978, %v982
      %v985 = vmul.f32 %v946, %v983
      %v986 = vmul.f32 %v947, %v983
      %v987 = vmul.f32 %v948, %v983
      %v988 = vmul.f32 %v949, %v983
      %v989 = vmul.f32 %v950, %v983
      %v990 = vmul.f32 %v951, %v983
      %v991 = vmul.f32 %v952, %v983
      %v992 = vmul.f32 %v953, %v983
      %v993 = vmul.f32 %v954, %v983
      %v994 = vmul.f32 %v955, %v983
      %v995 = vmul.f32 %v956, %v983
      %v996 = vmul.f32 %v957, %v983
      %v997 = vmul.f32 %v958, %v983
      %v998 = vmul.f32 %v959, %v983
      %v999 = vmul.f32 %v960, %v983
      %v1000 = vmul.f32 %v961, %v983
      %v1001 = vmul.f32 %v962, %v983
      %v1002 = vmul.f32 %v963, %v983
      %v1003 = vmul.f32 %v964, %v983
      %v1004 = vmul.f32 %v965, %v983
      %v1005 = vmul.f32 %v966, %v983
      %v1006 = vmul.f32 %v967, %v983
      %v1007 = vmul.f32 %v968, %v983
      %v1008 = vmul.f32 %v969, %v983
      %v1009 = vmul.f32 %v970, %v983
      %v1010 = vmul.f32 %v971, %v983
      %v1011 = vmul.f32 %v972, %v983
      %v1012 = vmul.f32 %v973, %v983
      %v1013 = vmul.f32 %v974, %v983
      %v1014 = vmul.f32 %v975, %v983
      %v1015 = vmul.f32 %v976, %v983
      %v1016 = vmul.f32 %v977, %v983
      %v1017 = vadd.f32 %v985, 0.0
      %v1018 = vadd.f32 %v986, 0.0
      %v1019 = vadd.f32 %v987, 0.0
      %v1020 = vadd.f32 %v988, 0.0
      %v1021 = vadd.f32 %v989, 0.0
      %v1022 = vadd.f32 %v990, 0.0
      %v1023 = vadd.f32 %v991, 0.0
      %v1024 = vadd.f32 %v992, 0.0
      %v1025 = vadd.f32 %v993, 0.0
      %v1026 = vadd.f32 %v994, 0.0
      %v1027 = vadd.f32 %v995, 0.0
      %v1028 = vadd.f32 %v996, 0.0
      %v1029 = vadd.f32 %v997, 0.0
      %v1030 = vadd.f32 %v998, 0.0
      %v1031 = vadd.f32 %v999, 0.0
      %v1032 = vadd.f32 %v1000, 0.0
      %v1033 = vadd.f32 %v1001, 0.0
      %v1034 = vadd.f32 %v1002, 0.0
      %v1035 = vadd.f32 %v1003, 0.0
      %v1036 = vadd.f32 %v1004, 0.0
      %v1037 = vadd.f32 %v1005, 0.0
      %v1038 = vadd.f32 %v1006, 0.0
      %v1039 = vadd.f32 %v1007, 0.0
      %v1040 = vadd.f32 %v1008, 0.0
      %v1041 = vadd.f32 %v1009, 0.0
      %v1042 = vadd.f32 %v1010, 0.0
      %v1043 = vadd.f32 %v1011, 0.0
      %v1044 = vadd.f32 %v1012, 0.0
      %v1045 = vadd.f32 %v1013, 0.0
      %v1046 = vadd.f32 %v1014, 0.0
      %v1047 = vadd.f32 %v1015, 0.0
      %v1048 = vadd.f32 %v1016, 0.0
      %v1049 = vld [vmem:[#allocation2 + $0x1] sm:$0xff]
      %v1050 = vld [vmem:[#allocation2 + $0x9] sm:$0xff]
      %v1051 = vld [vmem:[#allocation2 + $0x19] sm:$0xff]
      %v1052 = vld [vmem:[#allocation2 + $0x21] sm:$0xff]
      %v1053 = vld [vmem:[#allocation2 + $0x31] sm:$0xff]
      %v1054 = vld [vmem:[#allocation2 + $0x39] sm:$0xff]
      %v1055 = vld [vmem:[#allocation2 + $0x49] sm:$0xff]
      %v1056 = vld [vmem:[#allocation2 + $0x51] sm:$0xff]
      %v1057 = vld [vmem:[#allocation2 + $0x61] sm:$0xff]
      %v1058 = vld [vmem:[#allocation2 + $0x69] sm:$0xff]
      %v1059 = vld [vmem:[#allocation2 + $0x79] sm:$0xff]
      %v1060 = vld [vmem:[#allocation2 + $0x81] sm:$0xff]
      %v1061 = vld [vmem:[#allocation2 + $0x91] sm:$0xff]
      %v1062 = vld [vmem:[#allocation2 + $0x99] sm:$0xff]
      %v1063 = vld [vmem:[#allocation2 + $0xa9] sm:$0xff]
      %v1064 = vld [vmem:[#allocation2 + $0xb1] sm:$0xff]
      %v1065 = vld [vmem:[#allocation2 + $0xc1] sm:$0xff]
      %v1066 = vld [vmem:[#allocation2 + $0xc9] sm:$0xff]
      %v1067 = vld [vmem:[#allocation2 + $0xd9] sm:$0xff]
      %v1068 = vld [vmem:[#allocation2 + $0xe1] sm:$0xff]
      %v1069 = vld [vmem:[#allocation2 + $0xf1] sm:$0xff]
      %v1070 = vld [vmem:[#allocation2 + $0xf9] sm:$0xff]
      %v1071 = vld [vmem:[#allocation2 + $0x109] sm:$0xff]
      %v1072 = vld [vmem:[#allocation2 + $0x111] sm:$0xff]
      %v1073 = vld [vmem:[#allocation2 + $0x121] sm:$0xff]
      %v1074 = vld [vmem:[#allocation2 + $0x129] sm:$0xff]
      %v1075 = vld [vmem:[#allocation2 + $0x139] sm:$0xff]
      %v1076 = vld [vmem:[#allocation2 + $0x141] sm:$0xff]
      %v1077 = vld [vmem:[#allocation2 + $0x151] sm:$0xff]
      %v1078 = vld [vmem:[#allocation2 + $0x159] sm:$0xff]
      %v1079 = vld [vmem:[#allocation2 + $0x169] sm:$0xff]
      %v1080 = vld [vmem:[#allocation2 + $0x171] sm:$0xff]
      %s1081 = scalar_lea.vmem %s4, 1
      %v1082 = vld [vmem:[%s1081] sm:$0x1]
      %v1084 = vlaneseq
      %v1085 = vshrl.u32 %v1084, 7
      %v1086 = vsub.s32 0, %v1085
      %v1087 = vrot.slane %v1082, %v1086
      %v1089 = vmul.f32 %v1049, %v1087
      %v1090 = vmul.f32 %v1050, %v1087
      %v1091 = vmul.f32 %v1051, %v1087
      %v1092 = vmul.f32 %v1052, %v1087
      %v1093 = vmul.f32 %v1053, %v1087
      %v1094 = vmul.f32 %v1054, %v1087
      %v1095 = vmul.f32 %v1055, %v1087
      %v1096 = vmul.f32 %v1056, %v1087
      %v1097 = vmul.f32 %v1057, %v1087
      %v1098 = vmul.f32 %v1058, %v1087
      %v1099 = vmul.f32 %v1059, %v1087
      %v1100 = vmul.f32 %v1060, %v1087
      %v1101 = vmul.f32 %v1061, %v1087
      %v1102 = vmul.f32 %v1062, %v1087
      %v1103 = vmul.f32 %v1063, %v1087
      %v1104 = vmul.f32 %v1064, %v1087
      %v1105 = vmul.f32 %v1065, %v1087
      %v1106 = vmul.f32 %v1066, %v1087
      %v1107 = vmul.f32 %v1067, %v1087
      %v1108 = vmul.f32 %v1068, %v1087
      %v1109 = vmul.f32 %v1069, %v1087
      %v1110 = vmul.f32 %v1070, %v1087
      %v1111 = vmul.f32 %v1071, %v1087
      %v1112 = vmul.f32 %v1072, %v1087
      %v1113 = vmul.f32 %v1073, %v1087
      %v1114 = vmul.f32 %v1074, %v1087
      %v1115 = vmul.f32 %v1075, %v1087
      %v1116 = vmul.f32 %v1076, %v1087
      %v1117 = vmul.f32 %v1077, %v1087
      %v1118 = vmul.f32 %v1078, %v1087
      %v1119 = vmul.f32 %v1079, %v1087
      %v1120 = vmul.f32 %v1080, %v1087
      %v1121 = vadd.f32 %v1017, %v1089
      %v1122 = vadd.f32 %v1018, %v1090
      %v1123 = vadd.f32 %v1019, %v1091
      %v1124 = vadd.f32 %v1020, %v1092
      %v1125 = vadd.f32 %v1021, %v1093
      %v1126 = vadd.f32 %v1022, %v1094
      %v1127 = vadd.f32 %v1023, %v1095
      %v1128 = vadd.f32 %v1024, %v1096
      %v1129 = vadd.f32 %v1025, %v1097
      %v1130 = vadd.f32 %v1026, %v1098
      %v1131 = vadd.f32 %v1027, %v1099
      %v1132 = vadd.f32 %v1028, %v1100
      %v1133 = vadd.f32 %v1029, %v1101
      %v1134 = vadd.f32 %v1030, %v1102
      %v1135 = vadd.f32 %v1031, %v1103
      %v1136 = vadd.f32 %v1032, %v1104
      %v1137 = vadd.f32 %v1033, %v1105
      %v1138 = vadd.f32 %v1034, %v1106
      %v1139 = vadd.f32 %v1035, %v1107
      %v1140 = vadd.f32 %v1036, %v1108
      %v1141 = vadd.f32 %v1037, %v1109
      %v1142 = vadd.f32 %v1038, %v1110
      %v1143 = vadd.f32 %v1039, %v1111
      %v1144 = vadd.f32 %v1040, %v1112
      %v1145 = vadd.f32 %v1041, %v1113
      %v1146 = vadd.f32 %v1042, %v1114
      %v1147 = vadd.f32 %v1043, %v1115
      %v1148 = vadd.f32 %v1044, %v1116
      %v1149 = vadd.f32 %v1045, %v1117
      %v1150 = vadd.f32 %v1046, %v1118
      %v1151 = vadd.f32 %v1047, %v1119
      %v1152 = vadd.f32 %v1048, %v1120
      %v1153 = vld [vmem:[#allocation2 + $0x2] sm:$0xff]
      %v1154 = vld [vmem:[#allocation2 + $0xa] sm:$0xff]
      %v1155 = vld [vmem:[#allocation2 + $0x1a] sm:$0xff]
      %v1156 = vld [vmem:[#allocation2 + $0x22] sm:$0xff]
      %v1157 = vld [vmem:[#allocation2 + $0x32] sm:$0xff]
      %v1158 = vld [vmem:[#allocation2 + $0x3a] sm:$0xff]
      %v1159 = vld [vmem:[#allocation2 + $0x4a] sm:$0xff]
      %v1160 = vld [vmem:[#allocation2 + $0x52] sm:$0xff]
      %v1161 = vld [vmem:[#allocation2 + $0x62] sm:$0xff]
      %v1162 = vld [vmem:[#allocation2 + $0x6a] sm:$0xff]
      %v1163 = vld [vmem:[#allocation2 + $0x7a] sm:$0xff]
      %v1164 = vld [vmem:[#allocation2 + $0x82] sm:$0xff]
      %v1165 = vld [vmem:[#allocation2 + $0x92] sm:$0xff]
      %v1166 = vld [vmem:[#allocation2 + $0x9a] sm:$0xff]
      %v1167 = vld [vmem:[#allocation2 + $0xaa] sm:$0xff]
      %v1168 = vld [vmem:[#allocation2 + $0xb2] sm:$0xff]
      %v1169 = vld [vmem:[#allocation2 + $0xc2] sm:$0xff]
      %v1170 = vld [vmem:[#allocation2 + $0xca] sm:$0xff]
      %v1171 = vld [vmem:[#allocation2 + $0xda] sm:$0xff]
      %v1172 = vld [vmem:[#allocation2 + $0xe2] sm:$0xff]
      %v1173 = vld [vmem:[#allocation2 + $0xf2] sm:$0xff]
      %v1174 = vld [vmem:[#allocation2 + $0xfa] sm:$0xff]
      %v1175 = vld [vmem:[#allocation2 + $0x10a] sm:$0xff]
      %v1176 = vld [vmem:[#allocation2 + $0x112] sm:$0xff]
      %v1177 = vld [vmem:[#allocation2 + $0x122] sm:$0xff]
      %v1178 = vld [vmem:[#allocation2 + $0x12a] sm:$0xff]
      %v1179 = vld [vmem:[#allocation2 + $0x13a] sm:$0xff]
      %v1180 = vld [vmem:[#allocation2 + $0x142] sm:$0xff]
      %v1181 = vld [vmem:[#allocation2 + $0x152] sm:$0xff]
      %v1182 = vld [vmem:[#allocation2 + $0x15a] sm:$0xff]
      %v1183 = vld [vmem:[#allocation2 + $0x16a] sm:$0xff]
      %v1184 = vld [vmem:[#allocation2 + $0x172] sm:$0xff]
      %s1185 = scalar_lea.vmem %s4, 2
      %v1186 = vld [vmem:[%s1185] sm:$0x1]
      %v1188 = vlaneseq
      %v1189 = vshrl.u32 %v1188, 7
      %v1190 = vsub.s32 0, %v1189
      %v1191 = vrot.slane %v1186, %v1190
      %v1193 = vmul.f32 %v1153, %v1191
      %v1194 = vmul.f32 %v1154, %v1191
      %v1195 = vmul.f32 %v1155, %v1191
      %v1196 = vmul.f32 %v1156, %v1191
      %v1197 = vmul.f32 %v1157, %v1191
      %v1198 = vmul.f32 %v1158, %v1191
      %v1199 = vmul.f32 %v1159, %v1191
      %v1200 = vmul.f32 %v1160, %v1191
      %v1201 = vmul.f32 %v1161, %v1191
      %v1202 = vmul.f32 %v1162, %v1191
      %v1203 = vmul.f32 %v1163, %v1191
      %v1204 = vmul.f32 %v1164, %v1191
      %v1205 = vmul.f32 %v1165, %v1191
      %v1206 = vmul.f32 %v1166, %v1191
      %v1207 = vmul.f32 %v1167, %v1191
      %v1208 = vmul.f32 %v1168, %v1191
      %v1209 = vmul.f32 %v1169, %v1191
      %v1210 = vmul.f32 %v1170, %v1191
      %v1211 = vmul.f32 %v1171, %v1191
      %v1212 = vmul.f32 %v1172, %v1191
      %v1213 = vmul.f32 %v1173, %v1191
      %v1214 = vmul.f32 %v1174, %v1191
      %v1215 = vmul.f32 %v1175, %v1191
      %v1216 = vmul.f32 %v1176, %v1191
      %v1217 = vmul.f32 %v1177, %v1191
      %v1218 = vmul.f32 %v1178, %v1191
      %v1219 = vmul.f32 %v1179, %v1191
      %v1220 = vmul.f32 %v1180, %v1191
      %v1221 = vmul.f32 %v1181, %v1191
      %v1222 = vmul.f32 %v1182, %v1191
      %v1223 = vmul.f32 %v1183, %v1191
      %v1224 = vmul.f32 %v1184, %v1191
      %v1225 = vadd.f32 %v1121, %v1193
      %v1226 = vadd.f32 %v1122, %v1194
      %v1227 = vadd.f32 %v1123, %v1195
      %v1228 = vadd.f32 %v1124, %v1196
      %v1229 = vadd.f32 %v1125, %v1197
      %v1230 = vadd.f32 %v1126, %v1198
      %v1231 = vadd.f32 %v1127, %v1199
      %v1232 = vadd.f32 %v1128, %v1200
      %v1233 = vadd.f32 %v1129, %v1201
      %v1234 = vadd.f32 %v1130, %v1202
      %v1235 = vadd.f32 %v1131, %v1203
      %v1236 = vadd.f32 %v1132, %v1204
      %v1237 = vadd.f32 %v1133, %v1205
      %v1238 = vadd.f32 %v1134, %v1206
      %v1239 = vadd.f32 %v1135, %v1207
      %v1240 = vadd.f32 %v1136, %v1208
      %v1241 = vadd.f32 %v1137, %v1209
      %v1242 = vadd.f32 %v1138, %v1210
      %v1243 = vadd.f32 %v1139, %v1211
      %v1244 = vadd.f32 %v1140, %v1212
      %v1245 = vadd.f32 %v1141, %v1213
      %v1246 = vadd.f32 %v1142, %v1214
      %v1247 = vadd.f32 %v1143, %v1215
      %v1248 = vadd.f32 %v1144, %v1216
      %v1249 = vadd.f32 %v1145, %v1217
      %v1250 = vadd.f32 %v1146, %v1218
      %v1251 = vadd.f32 %v1147, %v1219
      %v1252 = vadd.f32 %v1148, %v1220
      %v1253 = vadd.f32 %v1149, %v1221
      %v1254 = vadd.f32 %v1150, %v1222
      %v1255 = vadd.f32 %v1151, %v1223
      %v1256 = vadd.f32 %v1152, %v1224
      %v1257 = vld [vmem:[%s913] sm:$0xff]
      %v1258 = vld [vmem:[%s913 + $0x8] sm:$0xff]
      %v1259 = vld [vmem:[%s913 + $0x18] sm:$0xff]
      %v1260 = vld [vmem:[%s913 + $0x20] sm:$0xff]
      %v1261 = vld [vmem:[%s913 + $0x30] sm:$0xff]
      %v1262 = vld [vmem:[%s913 + $0x38] sm:$0xff]
      %v1263 = vld [vmem:[%s913 + $0x48] sm:$0xff]
      %v1264 = vld [vmem:[%s913 + $0x50] sm:$0xff]
      %v1265 = vld [vmem:[%s913 + $0x60] sm:$0xff]
      %v1266 = vld [vmem:[%s913 + $0x68] sm:$0xff]
      %v1267 = vld [vmem:[%s913 + $0x78] sm:$0xff]
      %v1268 = vld [vmem:[%s913 + $0x80] sm:$0xff]
      %v1269 = vld [vmem:[%s913 + $0x90] sm:$0xff]
      %v1270 = vld [vmem:[%s913 + $0x98] sm:$0xff]
      %v1271 = vld [vmem:[%s913 + $0xa8] sm:$0xff]
      %v1272 = vld [vmem:[%s913 + $0xb0] sm:$0xff]
      %v1273 = vld [vmem:[%s913 + $0xc0] sm:$0xff]
      %v1274 = vld [vmem:[%s913 + $0xc8] sm:$0xff]
      %v1275 = vld [vmem:[%s913 + $0xd8] sm:$0xff]
      %v1276 = vld [vmem:[%s913 + $0xe0] sm:$0xff]
      %v1277 = vld [vmem:[%s913 + $0xf0] sm:$0xff]
      %v1278 = vld [vmem:[%s913 + $0xf8] sm:$0xff]
      %v1279 = vld [vmem:[%s913 + $0x108] sm:$0xff]
      %v1280 = vld [vmem:[%s913 + $0x110] sm:$0xff]
      %v1281 = vld [vmem:[%s913 + $0x120] sm:$0xff]
      %v1282 = vld [vmem:[%s913 + $0x128] sm:$0xff]
      %v1283 = vld [vmem:[%s913 + $0x138] sm:$0xff]
      %v1284 = vld [vmem:[%s913 + $0x140] sm:$0xff]
      %v1285 = vld [vmem:[%s913 + $0x150] sm:$0xff]
      %v1286 = vld [vmem:[%s913 + $0x158] sm:$0xff]
      %v1287 = vld [vmem:[%s913 + $0x168] sm:$0xff]
      %v1288 = vld [vmem:[%s913 + $0x170] sm:$0xff]
      %s1289 = scalar_lea.vmem %s4, 3
      %v1290 = vld [vmem:[%s1289] sm:$0x1]
      %v1292 = vlaneseq
      %v1293 = vshrl.u32 %v1292, 7
      %v1294 = vsub.s32 0, %v1293
      %v1295 = vrot.slane %v1290, %v1294
      %v1297 = vmul.f32 %v1257, %v1295
      %v1298 = vmul.f32 %v1258, %v1295
      %v1299 = vmul.f32 %v1259, %v1295
      %v1300 = vmul.f32 %v1260, %v1295
      %v1301 = vmul.f32 %v1261, %v1295
      %v1302 = vmul.f32 %v1262, %v1295
      %v1303 = vmul.f32 %v1263, %v1295
      %v1304 = vmul.f32 %v1264, %v1295
      %v1305 = vmul.f32 %v1265, %v1295
      %v1306 = vmul.f32 %v1266, %v1295
      %v1307 = vmul.f32 %v1267, %v1295
      %v1308 = vmul.f32 %v1268, %v1295
      %v1309 = vmul.f32 %v1269, %v1295
      %v1310 = vmul.f32 %v1270, %v1295
      %v1311 = vmul.f32 %v1271, %v1295
      %v1312 = vmul.f32 %v1272, %v1295
      %v1313 = vmul.f32 %v1273, %v1295
      %v1314 = vmul.f32 %v1274, %v1295
      %v1315 = vmul.f32 %v1275, %v1295
      %v1316 = vmul.f32 %v1276, %v1295
      %v1317 = vmul.f32 %v1277, %v1295
      %v1318 = vmul.f32 %v1278, %v1295
      %v1319 = vmul.f32 %v1279, %v1295
      %v1320 = vmul.f32 %v1280, %v1295
      %v1321 = vmul.f32 %v1281, %v1295
      %v1322 = vmul.f32 %v1282, %v1295
      %v1323 = vmul.f32 %v1283, %v1295
      %v1324 = vmul.f32 %v1284, %v1295
      %v1325 = vmul.f32 %v1285, %v1295
      %v1326 = vmul.f32 %v1286, %v1295
      %v1327 = vmul.f32 %v1287, %v1295
      %v1328 = vmul.f32 %v1288, %v1295
      %v1329 = vadd.f32 %v1225, %v1297
      %v1330 = vadd.f32 %v1226, %v1298
      %v1331 = vadd.f32 %v1227, %v1299
      %v1332 = vadd.f32 %v1228, %v1300
      %v1333 = vadd.f32 %v1229, %v1301
      %v1334 = vadd.f32 %v1230, %v1302
      %v1335 = vadd.f32 %v1231, %v1303
      %v1336 = vadd.f32 %v1232, %v1304
      %v1337 = vadd.f32 %v1233, %v1305
      %v1338 = vadd.f32 %v1234, %v1306
      %v1339 = vadd.f32 %v1235, %v1307
      %v1340 = vadd.f32 %v1236, %v1308
      %v1341 = vadd.f32 %v1237, %v1309
      %v1342 = vadd.f32 %v1238, %v1310
      %v1343 = vadd.f32 %v1239, %v1311
      %v1344 = vadd.f32 %v1240, %v1312
      %v1345 = vadd.f32 %v1241, %v1313
      %v1346 = vadd.f32 %v1242, %v1314
      %v1347 = vadd.f32 %v1243, %v1315
      %v1348 = vadd.f32 %v1244, %v1316
      %v1349 = vadd.f32 %v1245, %v1317
      %v1350 = vadd.f32 %v1246, %v1318
      %v1351 = vadd.f32 %v1247, %v1319
      %v1352 = vadd.f32 %v1248, %v1320
      %v1353 = vadd.f32 %v1249, %v1321
      %v1354 = vadd.f32 %v1250, %v1322
      %v1355 = vadd.f32 %v1251, %v1323
      %v1356 = vadd.f32 %v1252, %v1324
      %v1357 = vadd.f32 %v1253, %v1325
      %v1358 = vadd.f32 %v1254, %v1326
      %v1359 = vadd.f32 %v1255, %v1327
      %v1360 = vadd.f32 %v1256, %v1328
      %v1361 = vld [vmem:[%s913 + $0x1] sm:$0xff]
      %v1362 = vld [vmem:[%s913 + $0x9] sm:$0xff]
      %v1363 = vld [vmem:[%s913 + $0x19] sm:$0xff]
      %v1364 = vld [vmem:[%s913 + $0x21] sm:$0xff]
      %v1365 = vld [vmem:[%s913 + $0x31] sm:$0xff]
      %v1366 = vld [vmem:[%s913 + $0x39] sm:$0xff]
      %v1367 = vld [vmem:[%s913 + $0x49] sm:$0xff]
      %v1368 = vld [vmem:[%s913 + $0x51] sm:$0xff]
      %v1369 = vld [vmem:[%s913 + $0x61] sm:$0xff]
      %v1370 = vld [vmem:[%s913 + $0x69] sm:$0xff]
      %v1371 = vld [vmem:[%s913 + $0x79] sm:$0xff]
      %v1372 = vld [vmem:[%s913 + $0x81] sm:$0xff]
      %v1373 = vld [vmem:[%s913 + $0x91] sm:$0xff]
      %v1374 = vld [vmem:[%s913 + $0x99] sm:$0xff]
      %v1375 = vld [vmem:[%s913 + $0xa9] sm:$0xff]
      %v1376 = vld [vmem:[%s913 + $0xb1] sm:$0xff]
      %v1377 = vld [vmem:[%s913 + $0xc1] sm:$0xff]
      %v1378 = vld [vmem:[%s913 + $0xc9] sm:$0xff]
      %v1379 = vld [vmem:[%s913 + $0xd9] sm:$0xff]
      %v1380 = vld [vmem:[%s913 + $0xe1] sm:$0xff]
      %v1381 = vld [vmem:[%s913 + $0xf1] sm:$0xff]
      %v1382 = vld [vmem:[%s913 + $0xf9] sm:$0xff]
      %v1383 = vld [vmem:[%s913 + $0x109] sm:$0xff]
      %v1384 = vld [vmem:[%s913 + $0x111] sm:$0xff]
      %v1385 = vld [vmem:[%s913 + $0x121] sm:$0xff]
      %v1386 = vld [vmem:[%s913 + $0x129] sm:$0xff]
      %v1387 = vld [vmem:[%s913 + $0x139] sm:$0xff]
      %v1388 = vld [vmem:[%s913 + $0x141] sm:$0xff]
      %v1389 = vld [vmem:[%s913 + $0x151] sm:$0xff]
      %v1390 = vld [vmem:[%s913 + $0x159] sm:$0xff]
      %v1391 = vld [vmem:[%s913 + $0x169] sm:$0xff]
      %v1392 = vld [vmem:[%s913 + $0x171] sm:$0xff]
      %s1393 = scalar_lea.vmem %s4, 4
      %v1394 = vld [vmem:[%s1393] sm:$0x1]
      %v1396 = vlaneseq
      %v1397 = vshrl.u32 %v1396, 7
      %v1398 = vsub.s32 0, %v1397
      %v1399 = vrot.slane %v1394, %v1398
      %v1401 = vmul.f32 %v1361, %v1399
      %v1402 = vmul.f32 %v1362, %v1399
      %v1403 = vmul.f32 %v1363, %v1399
      %v1404 = vmul.f32 %v1364, %v1399
      %v1405 = vmul.f32 %v1365, %v1399
      %v1406 = vmul.f32 %v1366, %v1399
      %v1407 = vmul.f32 %v1367, %v1399
      %v1408 = vmul.f32 %v1368, %v1399
      %v1409 = vmul.f32 %v1369, %v1399
      %v1410 = vmul.f32 %v1370, %v1399
      %v1411 = vmul.f32 %v1371, %v1399
      %v1412 = vmul.f32 %v1372, %v1399
      %v1413 = vmul.f32 %v1373, %v1399
      %v1414 = vmul.f32 %v1374, %v1399
      %v1415 = vmul.f32 %v1375, %v1399
      %v1416 = vmul.f32 %v1376, %v1399
      %v1417 = vmul.f32 %v1377, %v1399
      %v1418 = vmul.f32 %v1378, %v1399
      %v1419 = vmul.f32 %v1379, %v1399
      %v1420 = vmul.f32 %v1380, %v1399
      %v1421 = vmul.f32 %v1381, %v1399
      %v1422 = vmul.f32 %v1382, %v1399
      %v1423 = vmul.f32 %v1383, %v1399
      %v1424 = vmul.f32 %v1384, %v1399
      %v1425 = vmul.f32 %v1385, %v1399
      %v1426 = vmul.f32 %v1386, %v1399
      %v1427 = vmul.f32 %v1387, %v1399
      %v1428 = vmul.f32 %v1388, %v1399
      %v1429 = vmul.f32 %v1389, %v1399
      %v1430 = vmul.f32 %v1390, %v1399
      %v1431 = vmul.f32 %v1391, %v1399
      %v1432 = vmul.f32 %v1392, %v1399
      %v1433 = vadd.f32 %v1329, %v1401
      %v1434 = vadd.f32 %v1330, %v1402
      %v1435 = vadd.f32 %v1331, %v1403
      %v1436 = vadd.f32 %v1332, %v1404
      %v1437 = vadd.f32 %v1333, %v1405
      %v1438 = vadd.f32 %v1334, %v1406
      %v1439 = vadd.f32 %v1335, %v1407
      %v1440 = vadd.f32 %v1336, %v1408
      %v1441 = vadd.f32 %v1337, %v1409
      %v1442 = vadd.f32 %v1338, %v1410
      %v1443 = vadd.f32 %v1339, %v1411
      %v1444 = vadd.f32 %v1340, %v1412
      %v1445 = vadd.f32 %v1341, %v1413
      %v1446 = vadd.f32 %v1342, %v1414
      %v1447 = vadd.f32 %v1343, %v1415
      %v1448 = vadd.f32 %v1344, %v1416
      %v1449 = vadd.f32 %v1345, %v1417
      %v1450 = vadd.f32 %v1346, %v1418
      %v1451 = vadd.f32 %v1347, %v1419
      %v1452 = vadd.f32 %v1348, %v1420
      %v1453 = vadd.f32 %v1349, %v1421
      %v1454 = vadd.f32 %v1350, %v1422
      %v1455 = vadd.f32 %v1351, %v1423
      %v1456 = vadd.f32 %v1352, %v1424
      %v1457 = vadd.f32 %v1353, %v1425
      %v1458 = vadd.f32 %v1354, %v1426
      %v1459 = vadd.f32 %v1355, %v1427
      %v1460 = vadd.f32 %v1356, %v1428
      %v1461 = vadd.f32 %v1357, %v1429
      %v1462 = vadd.f32 %v1358, %v1430
      %v1463 = vadd.f32 %v1359, %v1431
      %v1464 = vadd.f32 %v1360, %v1432
      %v1465 = vld [vmem:[%s913 + $0x2] sm:$0xff]
      %v1466 = vld [vmem:[%s913 + $0xa] sm:$0xff]
      %v1467 = vld [vmem:[%s913 + $0x1a] sm:$0xff]
      %v1468 = vld [vmem:[%s913 + $0x22] sm:$0xff]
      %v1469 = vld [vmem:[%s913 + $0x32] sm:$0xff]
      %v1470 = vld [vmem:[%s913 + $0x3a] sm:$0xff]
      %v1471 = vld [vmem:[%s913 + $0x4a] sm:$0xff]
      %v1472 = vld [vmem:[%s913 + $0x52] sm:$0xff]
      %v1473 = vld [vmem:[%s913 + $0x62] sm:$0xff]
      %v1474 = vld [vmem:[%s913 + $0x6a] sm:$0xff]
      %v1475 = vld [vmem:[%s913 + $0x7a] sm:$0xff]
      %v1476 = vld [vmem:[%s913 + $0x82] sm:$0xff]
      %v1477 = vld [vmem:[%s913 + $0x92] sm:$0xff]
      %v1478 = vld [vmem:[%s913 + $0x9a] sm:$0xff]
      %v1479 = vld [vmem:[%s913 + $0xaa] sm:$0xff]
      %v1480 = vld [vmem:[%s913 + $0xb2] sm:$0xff]
      %v1481 = vld [vmem:[%s913 + $0xc2] sm:$0xff]
      %v1482 = vld [vmem:[%s913 + $0xca] sm:$0xff]
      %v1483 = vld [vmem:[%s913 + $0xda] sm:$0xff]
      %v1484 = vld [vmem:[%s913 + $0xe2] sm:$0xff]
      %v1485 = vld [vmem:[%s913 + $0xf2] sm:$0xff]
      %v1486 = vld [vmem:[%s913 + $0xfa] sm:$0xff]
      %v1487 = vld [vmem:[%s913 + $0x10a] sm:$0xff]
      %v1488 = vld [vmem:[%s913 + $0x112] sm:$0xff]
      %v1489 = vld [vmem:[%s913 + $0x122] sm:$0xff]
      %v1490 = vld [vmem:[%s913 + $0x12a] sm:$0xff]
      %v1491 = vld [vmem:[%s913 + $0x13a] sm:$0xff]
      %v1492 = vld [vmem:[%s913 + $0x142] sm:$0xff]
      %v1493 = vld [vmem:[%s913 + $0x152] sm:$0xff]
      %v1494 = vld [vmem:[%s913 + $0x15a] sm:$0xff]
      %v1495 = vld [vmem:[%s913 + $0x16a] sm:$0xff]
      %v1496 = vld [vmem:[%s913 + $0x172] sm:$0xff]
      %s1497 = scalar_lea.vmem %s4, 5
      %v1498 = vld [vmem:[%s1497] sm:$0x1]
      %v1500 = vlaneseq
      %v1501 = vshrl.u32 %v1500, 7
      %v1502 = vsub.s32 0, %v1501
      %v1503 = vrot.slane %v1498, %v1502
      %v1505 = vmul.f32 %v1465, %v1503
      %v1506 = vmul.f32 %v1466, %v1503
      %v1507 = vmul.f32 %v1467, %v1503
      %v1508 = vmul.f32 %v1468, %v1503
      %v1509 = vmul.f32 %v1469, %v1503
      %v1510 = vmul.f32 %v1470, %v1503
      %v1511 = vmul.f32 %v1471, %v1503
      %v1512 = vmul.f32 %v1472, %v1503
      %v1513 = vmul.f32 %v1473, %v1503
      %v1514 = vmul.f32 %v1474, %v1503
      %v1515 = vmul.f32 %v1475, %v1503
      %v1516 = vmul.f32 %v1476, %v1503
      %v1517 = vmul.f32 %v1477, %v1503
      %v1518 = vmul.f32 %v1478, %v1503
      %v1519 = vmul.f32 %v1479, %v1503
      %v1520 = vmul.f32 %v1480, %v1503
      %v1521 = vmul.f32 %v1481, %v1503
      %v1522 = vmul.f32 %v1482, %v1503
      %v1523 = vmul.f32 %v1483, %v1503
      %v1524 = vmul.f32 %v1484, %v1503
      %v1525 = vmul.f32 %v1485, %v1503
      %v1526 = vmul.f32 %v1486, %v1503
      %v1527 = vmul.f32 %v1487, %v1503
      %v1528 = vmul.f32 %v1488, %v1503
      %v1529 = vmul.f32 %v1489, %v1503
      %v1530 = vmul.f32 %v1490, %v1503
      %v1531 = vmul.f32 %v1491, %v1503
      %v1532 = vmul.f32 %v1492, %v1503
      %v1533 = vmul.f32 %v1493, %v1503
      %v1534 = vmul.f32 %v1494, %v1503
      %v1535 = vmul.f32 %v1495, %v1503
      %v1536 = vmul.f32 %v1496, %v1503
      %v1537 = vadd.f32 %v1433, %v1505
      %v1538 = vadd.f32 %v1434, %v1506
      %v1539 = vadd.f32 %v1435, %v1507
      %v1540 = vadd.f32 %v1436, %v1508
      %v1541 = vadd.f32 %v1437, %v1509
      %v1542 = vadd.f32 %v1438, %v1510
      %v1543 = vadd.f32 %v1439, %v1511
      %v1544 = vadd.f32 %v1440, %v1512
      %v1545 = vadd.f32 %v1441, %v1513
      %v1546 = vadd.f32 %v1442, %v1514
      %v1547 = vadd.f32 %v1443, %v1515
      %v1548 = vadd.f32 %v1444, %v1516
      %v1549 = vadd.f32 %v1445, %v1517
      %v1550 = vadd.f32 %v1446, %v1518
      %v1551 = vadd.f32 %v1447, %v1519
      %v1552 = vadd.f32 %v1448, %v1520
      %v1553 = vadd.f32 %v1449, %v1521
      %v1554 = vadd.f32 %v1450, %v1522
      %v1555 = vadd.f32 %v1451, %v1523
      %v1556 = vadd.f32 %v1452, %v1524
      %v1557 = vadd.f32 %v1453, %v1525
      %v1558 = vadd.f32 %v1454, %v1526
      %v1559 = vadd.f32 %v1455, %v1527
      %v1560 = vadd.f32 %v1456, %v1528
      %v1561 = vadd.f32 %v1457, %v1529
      %v1562 = vadd.f32 %v1458, %v1530
      %v1563 = vadd.f32 %v1459, %v1531
      %v1564 = vadd.f32 %v1460, %v1532
      %v1565 = vadd.f32 %v1461, %v1533
      %v1566 = vadd.f32 %v1462, %v1534
      %v1567 = vadd.f32 %v1463, %v1535
      %v1568 = vadd.f32 %v1464, %v1536
      %s1569 = scalar_lea.vmem [#allocation2], 48
      %v1570 = vld [vmem:[%s1569] sm:$0xff]
      %v1571 = vld [vmem:[%s1569 + $0x8] sm:$0xff]
      %v1572 = vld [vmem:[%s1569 + $0x18] sm:$0xff]
      %v1573 = vld [vmem:[%s1569 + $0x20] sm:$0xff]
      %v1574 = vld [vmem:[%s1569 + $0x30] sm:$0xff]
      %v1575 = vld [vmem:[%s1569 + $0x38] sm:$0xff]
      %v1576 = vld [vmem:[%s1569 + $0x48] sm:$0xff]
      %v1577 = vld [vmem:[%s1569 + $0x50] sm:$0xff]
      %v1578 = vld [vmem:[%s1569 + $0x60] sm:$0xff]
      %v1579 = vld [vmem:[%s1569 + $0x68] sm:$0xff]
      %v1580 = vld [vmem:[%s1569 + $0x78] sm:$0xff]
      %v1581 = vld [vmem:[%s1569 + $0x80] sm:$0xff]
      %v1582 = vld [vmem:[%s1569 + $0x90] sm:$0xff]
      %v1583 = vld [vmem:[%s1569 + $0x98] sm:$0xff]
      %v1584 = vld [vmem:[%s1569 + $0xa8] sm:$0xff]
      %v1585 = vld [vmem:[%s1569 + $0xb0] sm:$0xff]
      %v1586 = vld [vmem:[%s1569 + $0xc0] sm:$0xff]
      %v1587 = vld [vmem:[%s1569 + $0xc8] sm:$0xff]
      %v1588 = vld [vmem:[%s1569 + $0xd8] sm:$0xff]
      %v1589 = vld [vmem:[%s1569 + $0xe0] sm:$0xff]
      %v1590 = vld [vmem:[%s1569 + $0xf0] sm:$0xff]
      %v1591 = vld [vmem:[%s1569 + $0xf8] sm:$0xff]
      %v1592 = vld [vmem:[%s1569 + $0x108] sm:$0xff]
      %v1593 = vld [vmem:[%s1569 + $0x110] sm:$0xff]
      %v1594 = vld [vmem:[%s1569 + $0x120] sm:$0xff]
      %v1595 = vld [vmem:[%s1569 + $0x128] sm:$0xff]
      %v1596 = vld [vmem:[%s1569 + $0x138] sm:$0xff]
      %v1597 = vld [vmem:[%s1569 + $0x140] sm:$0xff]
      %v1598 = vld [vmem:[%s1569 + $0x150] sm:$0xff]
      %v1599 = vld [vmem:[%s1569 + $0x158] sm:$0xff]
      %v1600 = vld [vmem:[%s1569 + $0x168] sm:$0xff]
      %v1601 = vld [vmem:[%s1569 + $0x170] sm:$0xff]
      %s1602 = scalar_lea.vmem %s4, 6
      %v1603 = vld [vmem:[%s1602] sm:$0x1]
      %v1605 = vlaneseq
      %v1606 = vshrl.u32 %v1605, 7
      %v1607 = vsub.s32 0, %v1606
      %v1608 = vrot.slane %v1603, %v1607
      %v1610 = vmul.f32 %v1570, %v1608
      %v1611 = vmul.f32 %v1571, %v1608
      %v1612 = vmul.f32 %v1572, %v1608
      %v1613 = vmul.f32 %v1573, %v1608
      %v1614 = vmul.f32 %v1574, %v1608
      %v1615 = vmul.f32 %v1575, %v1608
      %v1616 = vmul.f32 %v1576, %v1608
      %v1617 = vmul.f32 %v1577, %v1608
      %v1618 = vmul.f32 %v1578, %v1608
      %v1619 = vmul.f32 %v1579, %v1608
      %v1620 = vmul.f32 %v1580, %v1608
      %v1621 = vmul.f32 %v1581, %v1608
      %v1622 = vmul.f32 %v1582, %v1608
      %v1623 = vmul.f32 %v1583, %v1608
      %v1624 = vmul.f32 %v1584, %v1608
      %v1625 = vmul.f32 %v1585, %v1608
      %v1626 = vmul.f32 %v1586, %v1608
      %v1627 = vmul.f32 %v1587, %v1608
      %v1628 = vmul.f32 %v1588, %v1608
      %v1629 = vmul.f32 %v1589, %v1608
      %v1630 = vmul.f32 %v1590, %v1608
      %v1631 = vmul.f32 %v1591, %v1608
      %v1632 = vmul.f32 %v1592, %v1608
      %v1633 = vmul.f32 %v1593, %v1608
      %v1634 = vmul.f32 %v1594, %v1608
      %v1635 = vmul.f32 %v1595, %v1608
      %v1636 = vmul.f32 %v1596, %v1608
      %v1637 = vmul.f32 %v1597, %v1608
      %v1638 = vmul.f32 %v1598, %v1608
      %v1639 = vmul.f32 %v1599, %v1608
      %v1640 = vmul.f32 %v1600, %v1608
      %v1641 = vmul.f32 %v1601, %v1608
      %v1642 = vadd.f32 %v1537, %v1610
      %v1643 = vadd.f32 %v1538, %v1611
      %v1644 = vadd.f32 %v1539, %v1612
      %v1645 = vadd.f32 %v1540, %v1613
      %v1646 = vadd.f32 %v1541, %v1614
      %v1647 = vadd.f32 %v1542, %v1615
      %v1648 = vadd.f32 %v1543, %v1616
      %v1649 = vadd.f32 %v1544, %v1617
      %v1650 = vadd.f32 %v1545, %v1618
      %v1651 = vadd.f32 %v1546, %v1619
      %v1652 = vadd.f32 %v1547, %v1620
      %v1653 = vadd.f32 %v1548, %v1621
      %v1654 = vadd.f32 %v1549, %v1622
      %v1655 = vadd.f32 %v1550, %v1623
      %v1656 = vadd.f32 %v1551, %v1624
      %v1657 = vadd.f32 %v1552, %v1625
      %v1658 = vadd.f32 %v1553, %v1626
      %v1659 = vadd.f32 %v1554, %v1627
      %v1660 = vadd.f32 %v1555, %v1628
      %v1661 = vadd.f32 %v1556, %v1629
      %v1662 = vadd.f32 %v1557, %v1630
      %v1663 = vadd.f32 %v1558, %v1631
      %v1664 = vadd.f32 %v1559, %v1632
      %v1665 = vadd.f32 %v1560, %v1633
      %v1666 = vadd.f32 %v1561, %v1634
      %v1667 = vadd.f32 %v1562, %v1635
      %v1668 = vadd.f32 %v1563, %v1636
      %v1669 = vadd.f32 %v1564, %v1637
      %v1670 = vadd.f32 %v1565, %v1638
      %v1671 = vadd.f32 %v1566, %v1639
      %v1672 = vadd.f32 %v1567, %v1640
      %v1673 = vadd.f32 %v1568, %v1641
      %v1674 = vld [vmem:[%s1569 + $0x1] sm:$0xff]
      %v1675 = vld [vmem:[%s1569 + $0x9] sm:$0xff]
      %v1676 = vld [vmem:[%s1569 + $0x19] sm:$0xff]
      %v1677 = vld [vmem:[%s1569 + $0x21] sm:$0xff]
      %v1678 = vld [vmem:[%s1569 + $0x31] sm:$0xff]
      %v1679 = vld [vmem:[%s1569 + $0x39] sm:$0xff]
      %v1680 = vld [vmem:[%s1569 + $0x49] sm:$0xff]
      %v1681 = vld [vmem:[%s1569 + $0x51] sm:$0xff]
      %v1682 = vld [vmem:[%s1569 + $0x61] sm:$0xff]
      %v1683 = vld [vmem:[%s1569 + $0x69] sm:$0xff]
      %v1684 = vld [vmem:[%s1569 + $0x79] sm:$0xff]
      %v1685 = vld [vmem:[%s1569 + $0x81] sm:$0xff]
      %v1686 = vld [vmem:[%s1569 + $0x91] sm:$0xff]
      %v1687 = vld [vmem:[%s1569 + $0x99] sm:$0xff]
      %v1688 = vld [vmem:[%s1569 + $0xa9] sm:$0xff]
      %v1689 = vld [vmem:[%s1569 + $0xb1] sm:$0xff]
      %v1690 = vld [vmem:[%s1569 + $0xc1] sm:$0xff]
      %v1691 = vld [vmem:[%s1569 + $0xc9] sm:$0xff]
      %v1692 = vld [vmem:[%s1569 + $0xd9] sm:$0xff]
      %v1693 = vld [vmem:[%s1569 + $0xe1] sm:$0xff]
      %v1694 = vld [vmem:[%s1569 + $0xf1] sm:$0xff]
      %v1695 = vld [vmem:[%s1569 + $0xf9] sm:$0xff]
      %v1696 = vld [vmem:[%s1569 + $0x109] sm:$0xff]
      %v1697 = vld [vmem:[%s1569 + $0x111] sm:$0xff]
      %v1698 = vld [vmem:[%s1569 + $0x121] sm:$0xff]
      %v1699 = vld [vmem:[%s1569 + $0x129] sm:$0xff]
      %v1700 = vld [vmem:[%s1569 + $0x139] sm:$0xff]
      %v1701 = vld [vmem:[%s1569 + $0x141] sm:$0xff]
      %v1702 = vld [vmem:[%s1569 + $0x151] sm:$0xff]
      %v1703 = vld [vmem:[%s1569 + $0x159] sm:$0xff]
      %v1704 = vld [vmem:[%s1569 + $0x169] sm:$0xff]
      %v1705 = vld [vmem:[%s1569 + $0x171] sm:$0xff]
      %s1706 = scalar_lea.vmem %s4, 7
      %v1707 = vld [vmem:[%s1706] sm:$0x1]
      %v1709 = vlaneseq
      %v1710 = vshrl.u32 %v1709, 7
      %v1711 = vsub.s32 0, %v1710
      %v1712 = vrot.slane %v1707, %v1711
      %v1714 = vmul.f32 %v1674, %v1712
      %v1715 = vmul.f32 %v1675, %v1712
      %v1716 = vmul.f32 %v1676, %v1712
      %v1717 = vmul.f32 %v1677, %v1712
      %v1718 = vmul.f32 %v1678, %v1712
      %v1719 = vmul.f32 %v1679, %v1712
      %v1720 = vmul.f32 %v1680, %v1712
      %v1721 = vmul.f32 %v1681, %v1712
      %v1722 = vmul.f32 %v1682, %v1712
      %v1723 = vmul.f32 %v1683, %v1712
      %v1724 = vmul.f32 %v1684, %v1712
      %v1725 = vmul.f32 %v1685, %v1712
      %v1726 = vmul.f32 %v1686, %v1712
      %v1727 = vmul.f32 %v1687, %v1712
      %v1728 = vmul.f32 %v1688, %v1712
      %v1729 = vmul.f32 %v1689, %v1712
      %v1730 = vmul.f32 %v1690, %v1712
      %v1731 = vmul.f32 %v1691, %v1712
      %v1732 = vmul.f32 %v1692, %v1712
      %v1733 = vmul.f32 %v1693, %v1712
      %v1734 = vmul.f32 %v1694, %v1712
      %v1735 = vmul.f32 %v1695, %v1712
      %v1736 = vmul.f32 %v1696, %v1712
      %v1737 = vmul.f32 %v1697, %v1712
      %v1738 = vmul.f32 %v1698, %v1712
      %v1739 = vmul.f32 %v1699, %v1712
      %v1740 = vmul.f32 %v1700, %v1712
      %v1741 = vmul.f32 %v1701, %v1712
      %v1742 = vmul.f32 %v1702, %v1712
      %v1743 = vmul.f32 %v1703, %v1712
      %v1744 = vmul.f32 %v1704, %v1712
      %v1745 = vmul.f32 %v1705, %v1712
      %v1746 = vadd.f32 %v1642, %v1714
      %v1747 = vadd.f32 %v1643, %v1715
      %v1748 = vadd.f32 %v1644, %v1716
      %v1749 = vadd.f32 %v1645, %v1717
      %v1750 = vadd.f32 %v1646, %v1718
      %v1751 = vadd.f32 %v1647, %v1719
      %v1752 = vadd.f32 %v1648, %v1720
      %v1753 = vadd.f32 %v1649, %v1721
      %v1754 = vadd.f32 %v1650, %v1722
      %v1755 = vadd.f32 %v1651, %v1723
      %v1756 = vadd.f32 %v1652, %v1724
      %v1757 = vadd.f32 %v1653, %v1725
      %v1758 = vadd.f32 %v1654, %v1726
      %v1759 = vadd.f32 %v1655, %v1727
      %v1760 = vadd.f32 %v1656, %v1728
      %v1761 = vadd.f32 %v1657, %v1729
      %v1762 = vadd.f32 %v1658, %v1730
      %v1763 = vadd.f32 %v1659, %v1731
      %v1764 = vadd.f32 %v1660, %v1732
      %v1765 = vadd.f32 %v1661, %v1733
      %v1766 = vadd.f32 %v1662, %v1734
      %v1767 = vadd.f32 %v1663, %v1735
      %v1768 = vadd.f32 %v1664, %v1736
      %v1769 = vadd.f32 %v1665, %v1737
      %v1770 = vadd.f32 %v1666, %v1738
      %v1771 = vadd.f32 %v1667, %v1739
      %v1772 = vadd.f32 %v1668, %v1740
      %v1773 = vadd.f32 %v1669, %v1741
      %v1774 = vadd.f32 %v1670, %v1742
      %v1775 = vadd.f32 %v1671, %v1743
      %v1776 = vadd.f32 %v1672, %v1744
      %v1777 = vadd.f32 %v1673, %v1745
      %v1778 = vld [vmem:[%s1569 + $0x2] sm:$0xff]
      %v1779 = vld [vmem:[%s1569 + $0xa] sm:$0xff]
      %v1780 = vld [vmem:[%s1569 + $0x1a] sm:$0xff]
      %v1781 = vld [vmem:[%s1569 + $0x22] sm:$0xff]
      %v1782 = vld [vmem:[%s1569 + $0x32] sm:$0xff]
      %v1783 = vld [vmem:[%s1569 + $0x3a] sm:$0xff]
      %v1784 = vld [vmem:[%s1569 + $0x4a] sm:$0xff]
      %v1785 = vld [vmem:[%s1569 + $0x52] sm:$0xff]
      %v1786 = vld [vmem:[%s1569 + $0x62] sm:$0xff]
      %v1787 = vld [vmem:[%s1569 + $0x6a] sm:$0xff]
      %v1788 = vld [vmem:[%s1569 + $0x7a] sm:$0xff]
      %v1789 = vld [vmem:[%s1569 + $0x82] sm:$0xff]
      %v1790 = vld [vmem:[%s1569 + $0x92] sm:$0xff]
      %v1791 = vld [vmem:[%s1569 + $0x9a] sm:$0xff]
      %v1792 = vld [vmem:[%s1569 + $0xaa] sm:$0xff]
      %v1793 = vld [vmem:[%s1569 + $0xb2] sm:$0xff]
      %v1794 = vld [vmem:[%s1569 + $0xc2] sm:$0xff]
      %v1795 = vld [vmem:[%s1569 + $0xca] sm:$0xff]
      %v1796 = vld [vmem:[%s1569 + $0xda] sm:$0xff]
      %v1797 = vld [vmem:[%s1569 + $0xe2] sm:$0xff]
      %v1798 = vld [vmem:[%s1569 + $0xf2] sm:$0xff]
      %v1799 = vld [vmem:[%s1569 + $0xfa] sm:$0xff]
      %v1800 = vld [vmem:[%s1569 + $0x10a] sm:$0xff]
      %v1801 = vld [vmem:[%s1569 + $0x112] sm:$0xff]
      %v1802 = vld [vmem:[%s1569 + $0x122] sm:$0xff]
      %v1803 = vld [vmem:[%s1569 + $0x12a] sm:$0xff]
      %v1804 = vld [vmem:[%s1569 + $0x13a] sm:$0xff]
      %v1805 = vld [vmem:[%s1569 + $0x142] sm:$0xff]
      %v1806 = vld [vmem:[%s1569 + $0x152] sm:$0xff]
      %v1807 = vld [vmem:[%s1569 + $0x15a] sm:$0xff]
      %v1808 = vld [vmem:[%s1569 + $0x16a] sm:$0xff]
      %v1809 = vld [vmem:[%s1569 + $0x172] sm:$0xff]
      %s1810 = scalar_lea.vmem %s4, 8
      %v1811 = vld [vmem:[%s1810] sm:$0x1]
      %v1813 = vlaneseq
      %v1814 = vshrl.u32 %v1813, 7
      %v1815 = vsub.s32 0, %v1814
      %v1816 = vrot.slane %v1811, %v1815
      %v1818 = vmul.f32 %v1778, %v1816
      %v1819 = vmul.f32 %v1779, %v1816
      %v1820 = vmul.f32 %v1780, %v1816
      %v1821 = vmul.f32 %v1781, %v1816
      %v1822 = vmul.f32 %v1782, %v1816
      %v1823 = vmul.f32 %v1783, %v1816
      %v1824 = vmul.f32 %v1784, %v1816
      %v1825 = vmul.f32 %v1785, %v1816
      %v1826 = vmul.f32 %v1786, %v1816
      %v1827 = vmul.f32 %v1787, %v1816
      %v1828 = vmul.f32 %v1788, %v1816
      %v1829 = vmul.f32 %v1789, %v1816
      %v1830 = vmul.f32 %v1790, %v1816
      %v1831 = vmul.f32 %v1791, %v1816
      %v1832 = vmul.f32 %v1792, %v1816
      %v1833 = vmul.f32 %v1793, %v1816
      %v1834 = vmul.f32 %v1794, %v1816
      %v1835 = vmul.f32 %v1795, %v1816
      %v1836 = vmul.f32 %v1796, %v1816
      %v1837 = vmul.f32 %v1797, %v1816
      %v1838 = vmul.f32 %v1798, %v1816
      %v1839 = vmul.f32 %v1799, %v1816
      %v1840 = vmul.f32 %v1800, %v1816
      %v1841 = vmul.f32 %v1801, %v1816
      %v1842 = vmul.f32 %v1802, %v1816
      %v1843 = vmul.f32 %v1803, %v1816
      %v1844 = vmul.f32 %v1804, %v1816
      %v1845 = vmul.f32 %v1805, %v1816
      %v1846 = vmul.f32 %v1806, %v1816
      %v1847 = vmul.f32 %v1807, %v1816
      %v1848 = vmul.f32 %v1808, %v1816
      %v1849 = vmul.f32 %v1809, %v1816
      %v1850 = vadd.f32 %v1746, %v1818
      %v1851 = vadd.f32 %v1747, %v1819
      %v1852 = vadd.f32 %v1748, %v1820
      %v1853 = vadd.f32 %v1749, %v1821
      %v1854 = vadd.f32 %v1750, %v1822
      %v1855 = vadd.f32 %v1751, %v1823
      %v1856 = vadd.f32 %v1752, %v1824
      %v1857 = vadd.f32 %v1753, %v1825
      %v1858 = vadd.f32 %v1754, %v1826
      %v1859 = vadd.f32 %v1755, %v1827
      %v1860 = vadd.f32 %v1756, %v1828
      %v1861 = vadd.f32 %v1757, %v1829
      %v1862 = vadd.f32 %v1758, %v1830
      %v1863 = vadd.f32 %v1759, %v1831
      %v1864 = vadd.f32 %v1760, %v1832
      %v1865 = vadd.f32 %v1761, %v1833
      %v1866 = vadd.f32 %v1762, %v1834
      %v1867 = vadd.f32 %v1763, %v1835
      %v1868 = vadd.f32 %v1764, %v1836
      %v1869 = vadd.f32 %v1765, %v1837
      %v1870 = vadd.f32 %v1766, %v1838
      %v1871 = vadd.f32 %v1767, %v1839
      %v1872 = vadd.f32 %v1768, %v1840
      %v1873 = vadd.f32 %v1769, %v1841
      %v1874 = vadd.f32 %v1770, %v1842
      %v1875 = vadd.f32 %v1771, %v1843
      %v1876 = vadd.f32 %v1772, %v1844
      %v1877 = vadd.f32 %v1773, %v1845
      %v1878 = vadd.f32 %v1774, %v1846
      %v1879 = vadd.f32 %v1775, %v1847
      %v1880 = vadd.f32 %v1776, %v1848
      %v1881 = vadd.f32 %v1777, %v1849
      %v1882 = vld [vmem:[%s5] sm:$0x1]
      %v1884 = vlaneseq
      %v1885 = vshrl.u32 %v1884, 7
      %v1886 = vsub.s32 0, %v1885
      %v1887 = vrot.slane %v1882, %v1886
      %v1889 = vmul.f32 %v1850, %v1887
      %v1890 = vmul.f32 %v1851, %v1887
      %v1891 = vmul.f32 %v1852, %v1887
      %v1892 = vmul.f32 %v1853, %v1887
      %v1893 = vmul.f32 %v1854, %v1887
      %v1894 = vmul.f32 %v1855, %v1887
      %v1895 = vmul.f32 %v1856, %v1887
      %v1896 = vmul.f32 %v1857, %v1887
      %v1897 = vmul.f32 %v1858, %v1887
      %v1898 = vmul.f32 %v1859, %v1887
      %v1899 = vmul.f32 %v1860, %v1887
      %v1900 = vmul.f32 %v1861, %v1887
      %v1901 = vmul.f32 %v1862, %v1887
      %v1902 = vmul.f32 %v1863, %v1887
      %v1903 = vmul.f32 %v1864, %v1887
      %v1904 = vmul.f32 %v1865, %v1887
      %v1905 = vmul.f32 %v1866, %v1887
      %v1906 = vmul.f32 %v1867, %v1887
      %v1907 = vmul.f32 %v1868, %v1887
      %v1908 = vmul.f32 %v1869, %v1887
      %v1909 = vmul.f32 %v1870, %v1887
      %v1910 = vmul.f32 %v1871, %v1887
      %v1911 = vmul.f32 %v1872, %v1887
      %v1912 = vmul.f32 %v1873, %v1887
      %v1913 = vmul.f32 %v1874, %v1887
      %v1914 = vmul.f32 %v1875, %v1887
      %v1915 = vmul.f32 %v1876, %v1887
      %v1916 = vmul.f32 %v1877, %v1887
      %v1917 = vmul.f32 %v1878, %v1887
      %v1918 = vmul.f32 %v1879, %v1887
      %v1919 = vmul.f32 %v1880, %v1887
      %v1920 = vmul.f32 %v1881, %v1887
      %v1921 = vld [vmem:[%s6] sm:$0x1]
      %v1923 = vlaneseq
      %v1924 = vshrl.u32 %v1923, 7
      %v1925 = vsub.s32 0, %v1924
      %v1926 = vrot.slane %v1921, %v1925
      %v1928 = vadd.f32 %v1889, %v1926
      %v1929 = vadd.f32 %v1890, %v1926
      %v1930 = vadd.f32 %v1891, %v1926
      %v1931 = vadd.f32 %v1892, %v1926
      %v1932 = vadd.f32 %v1893, %v1926
      %v1933 = vadd.f32 %v1894, %v1926
      %v1934 = vadd.f32 %v1895, %v1926
      %v1935 = vadd.f32 %v1896, %v1926
      %v1936 = vadd.f32 %v1897, %v1926
      %v1937 = vadd.f32 %v1898, %v1926
      %v1938 = vadd.f32 %v1899, %v1926
      %v1939 = vadd.f32 %v1900, %v1926
      %v1940 = vadd.f32 %v1901, %v1926
      %v1941 = vadd.f32 %v1902, %v1926
      %v1942 = vadd.f32 %v1903, %v1926
      %v1943 = vadd.f32 %v1904, %v1926
      %v1944 = vadd.f32 %v1905, %v1926
      %v1945 = vadd.f32 %v1906, %v1926
      %v1946 = vadd.f32 %v1907, %v1926
      %v1947 = vadd.f32 %v1908, %v1926
      %v1948 = vadd.f32 %v1909, %v1926
      %v1949 = vadd.f32 %v1910, %v1926
      %v1950 = vadd.f32 %v1911, %v1926
      %v1951 = vadd.f32 %v1912, %v1926
      %v1952 = vadd.f32 %v1913, %v1926
      %v1953 = vadd.f32 %v1914, %v1926
      %v1954 = vadd.f32 %v1915, %v1926
      %v1955 = vadd.f32 %v1916, %v1926
      %v1956 = vadd.f32 %v1917, %v1926
      %v1957 = vadd.f32 %v1918, %v1926
      %v1958 = vadd.f32 %v1919, %v1926
      %v1959 = vadd.f32 %v1920, %v1926
      %v1960 = vmax.f32 %v1928, 0.0
      %v1961 = vmax.f32 %v1929, 0.0
      %v1962 = vmax.f32 %v1930, 0.0
      %v1963 = vmax.f32 %v1931, 0.0
      %v1964 = vmax.f32 %v1932, 0.0
      %v1965 = vmax.f32 %v1933, 0.0
      %v1966 = vmax.f32 %v1934, 0.0
      %v1967 = vmax.f32 %v1935, 0.0
      %v1968 = vmax.f32 %v1936, 0.0
      %v1969 = vmax.f32 %v1937, 0.0
      %v1970 = vmax.f32 %v1938, 0.0
      %v1971 = vmax.f32 %v1939, 0.0
      %v1972 = vmax.f32 %v1940, 0.0
      %v1973 = vmax.f32 %v1941, 0.0
      %v1974 = vmax.f32 %v1942, 0.0
      %v1975 = vmax.f32 %v1943, 0.0
      %v1976 = vmax.f32 %v1944, 0.0
      %v1977 = vmax.f32 %v1945, 0.0
      %v1978 = vmax.f32 %v1946, 0.0
      %v1979 = vmax.f32 %v1947, 0.0
      %v1980 = vmax.f32 %v1948, 0.0
      %v1981 = vmax.f32 %v1949, 0.0
      %v1982 = vmax.f32 %v1950, 0.0
      %v1983 = vmax.f32 %v1951, 0.0
      %v1984 = vmax.f32 %v1952, 0.0
      %v1985 = vmax.f32 %v1953, 0.0
      %v1986 = vmax.f32 %v1954, 0.0
      %v1987 = vmax.f32 %v1955, 0.0
      %v1988 = vmax.f32 %v1956, 0.0
      %v1989 = vmax.f32 %v1957, 0.0
      %v1990 = vmax.f32 %v1958, 0.0
      %v1991 = vmax.f32 %v1959, 0.0
      %v1992 = vmin.f32 %v1960, 6.0
      %v1993 = vmin.f32 %v1961, 6.0
      %v1994 = vmin.f32 %v1962, 6.0
      %v1995 = vmin.f32 %v1963, 6.0
      %v1996 = vmin.f32 %v1964, 6.0
      %v1997 = vmin.f32 %v1965, 6.0
      %v1998 = vmin.f32 %v1966, 6.0
      %v1999 = vmin.f32 %v1967, 6.0
      %v2000 = vmin.f32 %v1968, 6.0
      %v2001 = vmin.f32 %v1969, 6.0
      %v2002 = vmin.f32 %v1970, 6.0
      %v2003 = vmin.f32 %v1971, 6.0
      %v2004 = vmin.f32 %v1972, 6.0
      %v2005 = vmin.f32 %v1973, 6.0
      %v2006 = vmin.f32 %v1974, 6.0
      %v2007 = vmin.f32 %v1975, 6.0
      %v2008 = vmin.f32 %v1976, 6.0
      %v2009 = vmin.f32 %v1977, 6.0
      %v2010 = vmin.f32 %v1978, 6.0
      %v2011 = vmin.f32 %v1979, 6.0
      %v2012 = vmin.f32 %v1980, 6.0
      %v2013 = vmin.f32 %v1981, 6.0
      %v2014 = vmin.f32 %v1982, 6.0
      %v2015 = vmin.f32 %v1983, 6.0
      %v2016 = vmin.f32 %v1984, 6.0
      %v2017 = vmin.f32 %v1985, 6.0
      %v2018 = vmin.f32 %v1986, 6.0
      %v2019 = vmin.f32 %v1987, 6.0
      %v2020 = vmin.f32 %v1988, 6.0
      %v2021 = vmin.f32 %v1989, 6.0
      %v2022 = vmin.f32 %v1990, 6.0
      %v2023 = vmin.f32 %v1991, 6.0
      %v2024 = vld [vmem:[%s7] sm:$0xff]
      %v2025 = vld [vmem:[%s7 + $0x8] sm:$0xff]
      %v2026 = vld [vmem:[%s7 + $0x10] sm:$0xff]
      %v2027 = vld [vmem:[%s7 + $0x18] sm:$0xff]
      %v2029 = vsel %vm857, %v1992, 0
      %v2032 = vsel %vm857, %v1993, 0
      %v2035 = vsel %vm857, %v1994, 0
      %v2038 = vsel %vm857, %v1995, 0
      %v2041 = vsel %vm857, %v1996, 0
      %v2044 = vsel %vm857, %v1997, 0
      %v2047 = vsel %vm857, %v1998, 0
      %v2050 = vsel %vm857, %v1999, 0
      %v2053 = vsel %vm857, %v2000, 0
      %v2056 = vsel %vm857, %v2001, 0
      %v2059 = vsel %vm857, %v2002, 0
      %v2062 = vsel %vm857, %v2003, 0
      %v2065 = vsel %vm857, %v2004, 0
      %v2068 = vsel %vm857, %v2005, 0
      %v2071 = vsel %vm857, %v2006, 0
      %v2074 = vsel %vm857, %v2007, 0
      %v2077 = vsel %vm857, %v2008, 0
      %v2080 = vsel %vm857, %v2009, 0
      %v2083 = vsel %vm857, %v2010, 0
      %v2086 = vsel %vm857, %v2011, 0
      %v2089 = vsel %vm857, %v2012, 0
      %v2092 = vsel %vm857, %v2013, 0
      %v2095 = vsel %vm857, %v2014, 0
      %v2098 = vsel %vm857, %v2015, 0
      %v2101 = vsel %vm857, %v2016, 0
      %v2104 = vsel %vm857, %v2017, 0
      %v2107 = vsel %vm857, %v2018, 0
      %v2110 = vsel %vm857, %v2019, 0
      %v2113 = vsel %vm857, %v2020, 0
      %v2116 = vsel %vm857, %v2021, 0
      %v2119 = vsel %vm857, %v2022, 0
      %v2122 = vsel %vm857, %v2023, 0
      %2124 = vmatprep.subr.mxu0 0.0
      %2125 = vmatpush1.msra.mxu0 %v2024
      %2126 = vmatprep.subr.mxu0 0.0
      %2127 = vmatpush1.msra.mxu0 %v2025
      %2128 = vmatprep.subr.mxu0 0.0
      %2129 = vmatpush1.msra.mxu0 %v2026
      %2130 = vmatprep.subr.mxu0 0.0
      %2131 = vmatpush1.msra.mxu0 %v2027
      %2132 = vmatprep.subr.mxu0 0.0
      %2133 = vmatpush1.msra.mxu0 0.0
      %2134 = vmatprep.subr.mxu0 0.0
      %2135 = vmatpush1.msra.mxu0 0.0
      %2136 = vmatprep.subr.mxu0 0.0
      %2137 = vmatpush1.msra.mxu0 0.0
      %2138 = vmatprep.subr.mxu0 0.0
      %2139 = vmatpush1.msra.mxu0 0.0
      %2140 = vmatprep.subr.mxu0 0.0
      %2141 = vmatpush1.msra.mxu0 0.0
      %2142 = vmatprep.subr.mxu0 0.0
      %2143 = vmatpush1.msra.mxu0 0.0
      %2144 = vmatprep.subr.mxu0 0.0
      %2145 = vmatpush1.msra.mxu0 0.0
      %2146 = vmatprep.subr.mxu0 0.0
      %2147 = vmatpush1.msra.mxu0 0.0
      %2148 = vmatprep.subr.mxu0 0.0
      %2149 = vmatpush1.msra.mxu0 0.0
      %2150 = vmatprep.subr.mxu0 0.0
      %2151 = vmatpush1.msra.mxu0 0.0
      %2152 = vmatprep.subr.mxu0 0.0
      %2153 = vmatpush1.msra.mxu0 0.0
      %2154 = vmatprep.subr.mxu0 0.0
      %2155 = vmatpush1.msra.mxu0 0.0
      %2156 = vmatprep.subr.mxu0 0.0
      %2157 = vmatpush1.msra.mxu0 0.0
      %2158 = vmatprep.subr.mxu0 0.0
      %2159 = vmatpush1.msra.mxu0 0.0
      %2160 = vmatprep.subr.mxu0 0.0
      %2161 = vmatpush1.msra.mxu0 0.0
      %2162 = vmatprep.subr.mxu0 0.0
      %2163 = vmatpush1.msra.mxu0 0.0
      %2164 = vmatprep.subr.mxu0 0.0
      %2165 = vmatpush1.msra.mxu0 0.0
      %2166 = vmatprep.subr.mxu0 0.0
      %2167 = vmatpush1.msra.mxu0 0.0
      %2168 = vmatprep.subr.mxu0 0.0
      %2169 = vmatpush1.msra.mxu0 0.0
      %2170 = vmatprep.subr.mxu0 0.0
      %2171 = vmatpush1.msra.mxu0 0.0
      %2172 = vmatprep.subr.mxu0 0.0
      %2173 = vmatpush1.msra.mxu0 0.0
      %2174 = vmatprep.subr.mxu0 0.0
      %2175 = vmatpush1.msra.mxu0 0.0
      %2176 = vmatprep.subr.mxu0 0.0
      %2177 = vmatpush1.msra.mxu0 0.0
      %2178 = vmatprep.subr.mxu0 0.0
      %2179 = vmatpush1.msra.mxu0 0.0
      %2180 = vmatprep.subr.mxu0 0.0
      %2181 = vmatpush1.msra.mxu0 0.0
      %2182 = vmatprep.subr.mxu0 0.0
      %2183 = vmatpush1.msra.mxu0 0.0
      %2184 = vmatprep.subr.mxu0 0.0
      %2185 = vmatpush1.msra.mxu0 0.0
      %2186 = vmatprep.subr.mxu0 0.0
      %2187 = vmatpush1.msra.mxu0 0.0
      %2188 = vmatprep.mubr.f32.mxu0 0.0
      %2189 = vmatmul.mubr.f32.gmra.mrb[0].mxu0 %v2029
      %v2190 = vpop.f32.mrb[0].mxu0
      %v2191 = vadd.f32 0.0, %v2190
      %v2192 = vpop.f32.mrb[0].mxu0
      %2193 = vmatprep.mubr.f32.mxu0 0.0
      %2194 = vmatmul.mubr.f32.gmra.mrb[0].mxu0 %v2032
      %v2195 = vpop.f32.mrb[0].mxu0
      %v2196 = vadd.f32 0.0, %v2195
      %v2197 = vpop.f32.mrb[0].mxu0
      %2198 = vmatprep.mubr.f32.mxu0 0.0
      %2199 = vmatmul.mubr.f32.gmra.mrb[0].mxu0 %v2035
      %v2200 = vpop.f32.mrb[0].mxu0
      %v2201 = vadd.f32 0.0, %v2200
      %v2202 = vpop.f32.mrb[0].mxu0
      %2203 = vmatprep.mubr.f32.mxu0 0.0
      %2204 = vmatmul.mubr.f32.gmra.mrb[0].mxu0 %v2038
      %v2205 = vpop.f32.mrb[0].mxu0
      %v2206 = vadd.f32 0.0, %v2205
      %v2207 = vpop.f32.mrb[0].mxu0
      %2208 = vmatprep.mubr.f32.mxu0 0.0
      %2209 = vmatmul.mubr.f32.gmra.mrb[0].mxu0 %v2041
      %v2210 = vpop.f32.mrb[0].mxu0
      %v2211 = vadd.f32 0.0, %v2210
      %v2212 = vpop.f32.mrb[0].mxu0
      %2213 = vmatprep.mubr.f32.mxu0 0.0
      %2214 = vmatmul.mubr.f32.gmra.mrb[0].mxu0 %v2044
      %v2215 = vpop.f32.mrb[0].mxu0
      %v2216 = vadd.f32 0.0, %v2215
      %v2217 = vpop.f32.mrb[0].mxu0
      %2218 = vmatprep.mubr.f32.mxu0 0.0
      %2219 = vmatmul.mubr.f32.gmra.mrb[0].mxu0 %v2047
      %v2220 = vpop.f32.mrb[0].mxu0
      %v2221 = vadd.f32 0.0, %v2220
      %v2222 = vpop.f32.mrb[0].mxu0
      %2223 = vmatprep.mubr.f32.mxu0 0.0
      %2224 = vmatmul.mubr.f32.gmra.mrb[0].mxu0 %v2050
      %v2225 = vpop.f32.mrb[0].mxu0
      %v2226 = vadd.f32 0.0, %v2225
      %v2227 = vpop.f32.mrb[0].mxu0
      %2228 = vmatprep.mubr.f32.mxu0 0.0
      %2229 = vmatmul.mubr.f32.gmra.mrb[0].mxu0 %v2053
      %v2230 = vpop.f32.mrb[0].mxu0
      %v2231 = vadd.f32 0.0, %v2230
      %v2232 = vpop.f32.mrb[0].mxu0
      %2233 = vmatprep.mubr.f32.mxu0 0.0
      %2234 = vmatmul.mubr.f32.gmra.mrb[0].mxu0 %v2056
      %v2235 = vpop.f32.mrb[0].mxu0
      %v2236 = vadd.f32 0.0, %v2235
      %v2237 = vpop.f32.mrb[0].mxu0
      %2238 = vmatprep.mubr.f32.mxu0 0.0
      %2239 = vmatmul.mubr.f32.gmra.mrb[0].mxu0 %v2059
      %v2240 = vpop.f32.mrb[0].mxu0
      %v2241 = vadd.f32 0.0, %v2240
      %v2242 = vpop.f32.mrb[0].mxu0
      %2243 = vmatprep.mubr.f32.mxu0 0.0
      %2244 = vmatmul.mubr.f32.gmra.mrb[0].mxu0 %v2062
      %v2245 = vpop.f32.mrb[0].mxu0
      %v2246 = vadd.f32 0.0, %v2245
      %v2247 = vpop.f32.mrb[0].mxu0
      %2248 = vmatprep.mubr.f32.mxu0 0.0
      %2249 = vmatmul.mubr.f32.gmra.mrb[0].mxu0 %v2065
      %v2250 = vpop.f32.mrb[0].mxu0
      %v2251 = vadd.f32 0.0, %v2250
      %v2252 = vpop.f32.mrb[0].mxu0
      %2253 = vmatprep.mubr.f32.mxu0 0.0
      %2254 = vmatmul.mubr.f32.gmra.mrb[0].mxu0 %v2068
      %v2255 = vpop.f32.mrb[0].mxu0
      %v2256 = vadd.f32 0.0, %v2255
      %v2257 = vpop.f32.mrb[0].mxu0
      %2258 = vmatprep.mubr.f32.mxu0 0.0
      %2259 = vmatmul.mubr.f32.gmra.mrb[0].mxu0 %v2071
      %v2260 = vpop.f32.mrb[0].mxu0
      %v2261 = vadd.f32 0.0, %v2260
      %v2262 = vpop.f32.mrb[0].mxu0
      %2263 = vmatprep.mubr.f32.mxu0 0.0
      %2264 = vmatmul.mubr.f32.gmra.mrb[0].mxu0 %v2074
      %v2265 = vpop.f32.mrb[0].mxu0
      %v2266 = vadd.f32 0.0, %v2265
      %v2267 = vpop.f32.mrb[0].mxu0
      %2268 = vmatprep.mubr.f32.mxu0 0.0
      %2269 = vmatmul.mubr.f32.gmra.mrb[0].mxu0 %v2077
      %v2270 = vpop.f32.mrb[0].mxu0
      %v2271 = vadd.f32 0.0, %v2270
      %v2272 = vpop.f32.mrb[0].mxu0
      %2273 = vmatprep.mubr.f32.mxu0 0.0
      %2274 = vmatmul.mubr.f32.gmra.mrb[0].mxu0 %v2080
      %v2275 = vpop.f32.mrb[0].mxu0
      %v2276 = vadd.f32 0.0, %v2275
      %v2277 = vpop.f32.mrb[0].mxu0
      %2278 = vmatprep.mubr.f32.mxu0 0.0
      %2279 = vmatmul.mubr.f32.gmra.mrb[0].mxu0 %v2083
      %v2280 = vpop.f32.mrb[0].mxu0
      %v2281 = vadd.f32 0.0, %v2280
      %v2282 = vpop.f32.mrb[0].mxu0
      %2283 = vmatprep.mubr.f32.mxu0 0.0
      %2284 = vmatmul.mubr.f32.gmra.mrb[0].mxu0 %v2086
      %v2285 = vpop.f32.mrb[0].mxu0
      %v2286 = vadd.f32 0.0, %v2285
      %v2287 = vpop.f32.mrb[0].mxu0
      %2288 = vmatprep.mubr.f32.mxu0 0.0
      %2289 = vmatmul.mubr.f32.gmra.mrb[0].mxu0 %v2089
      %v2290 = vpop.f32.mrb[0].mxu0
      %v2291 = vadd.f32 0.0, %v2290
      %v2292 = vpop.f32.mrb[0].mxu0
      %2293 = vmatprep.mubr.f32.mxu0 0.0
      %2294 = vmatmul.mubr.f32.gmra.mrb[0].mxu0 %v2092
      %v2295 = vpop.f32.mrb[0].mxu0
      %v2296 = vadd.f32 0.0, %v2295
      %v2297 = vpop.f32.mrb[0].mxu0
      %2298 = vmatprep.mubr.f32.mxu0 0.0
      %2299 = vmatmul.mubr.f32.gmra.mrb[0].mxu0 %v2095
      %v2300 = vpop.f32.mrb[0].mxu0
      %v2301 = vadd.f32 0.0, %v2300
      %v2302 = vpop.f32.mrb[0].mxu0
      %2303 = vmatprep.mubr.f32.mxu0 0.0
      %2304 = vmatmul.mubr.f32.gmra.mrb[0].mxu0 %v2098
      %v2305 = vpop.f32.mrb[0].mxu0
      %v2306 = vadd.f32 0.0, %v2305
      %v2307 = vpop.f32.mrb[0].mxu0
      %2308 = vmatprep.mubr.f32.mxu0 0.0
      %2309 = vmatmul.mubr.f32.gmra.mrb[0].mxu0 %v2101
      %v2310 = vpop.f32.mrb[0].mxu0
      %v2311 = vadd.f32 0.0, %v2310
      %v2312 = vpop.f32.mrb[0].mxu0
      %2313 = vmatprep.mubr.f32.mxu0 0.0
      %2314 = vmatmul.mubr.f32.gmra.mrb[0].mxu0 %v2104
      %v2315 = vpop.f32.mrb[0].mxu0
      %v2316 = vadd.f32 0.0, %v2315
      %v2317 = vpop.f32.mrb[0].mxu0
      %2318 = vmatprep.mubr.f32.mxu0 0.0
      %2319 = vmatmul.mubr.f32.gmra.mrb[0].mxu0 %v2107
      %v2320 = vpop.f32.mrb[0].mxu0
      %v2321 = vadd.f32 0.0, %v2320
      %v2322 = vpop.f32.mrb[0].mxu0
      %2323 = vmatprep.mubr.f32.mxu0 0.0
      %2324 = vmatmul.mubr.f32.gmra.mrb[0].mxu0 %v2110
      %v2325 = vpop.f32.mrb[0].mxu0
      %v2326 = vadd.f32 0.0, %v2325
      %v2327 = vpop.f32.mrb[0].mxu0
      %2328 = vmatprep.mubr.f32.mxu0 0.0
      %2329 = vmatmul.mubr.f32.gmra.mrb[0].mxu0 %v2113
      %v2330 = vpop.f32.mrb[0].mxu0
      %v2331 = vadd.f32 0.0, %v2330
      %v2332 = vpop.f32.mrb[0].mxu0
      %2333 = vmatprep.mubr.f32.mxu0 0.0
      %2334 = vmatmul.mubr.f32.gmra.mrb[0].mxu0 %v2116
      %v2335 = vpop.f32.mrb[0].mxu0
      %v2336 = vadd.f32 0.0, %v2335
      %v2337 = vpop.f32.mrb[0].mxu0
      %2338 = vmatprep.mubr.f32.mxu0 0.0
      %2339 = vmatmul.mubr.f32.gmra.mrb[0].mxu0 %v2119
      %v2340 = vpop.f32.mrb[0].mxu0
      %v2341 = vadd.f32 0.0, %v2340
      %v2342 = vpop.f32.mrb[0].mxu0
      %2343 = vmatprep.mubr.f32.mxu0 0.0
      %2344 = vmatmul.mubr.f32.gmra.mrb[0].mxu0 %v2122
      %v2345 = vpop.f32.mrb[0].mxu0
      %v2346 = vadd.f32 0.0, %v2345
      %v2347 = vpop.f32.mrb[0].mxu0
      %2348 = vdwg.mxu0
      %v2349 = vld [vmem:[%s8] sm:$0x1]
      %v2351 = vlaneseq
      %v2352 = vshrl.u32 %v2351, 7
      %v2353 = vsub.s32 0, %v2352
      %v2354 = vrot.slane %v2349, %v2353
      %v2356 = vmul.f32 %v2191, %v2354
      %v2357 = vmul.f32 %v2196, %v2354
      %v2358 = vmul.f32 %v2201, %v2354
      %v2359 = vmul.f32 %v2206, %v2354
      %v2360 = vmul.f32 %v2211, %v2354
      %v2361 = vmul.f32 %v2216, %v2354
      %v2362 = vmul.f32 %v2221, %v2354
      %v2363 = vmul.f32 %v2226, %v2354
      %v2364 = vmul.f32 %v2231, %v2354
      %v2365 = vmul.f32 %v2236, %v2354
      %v2366 = vmul.f32 %v2241, %v2354
      %v2367 = vmul.f32 %v2246, %v2354
      %v2368 = vmul.f32 %v2251, %v2354
      %v2369 = vmul.f32 %v2256, %v2354
      %v2370 = vmul.f32 %v2261, %v2354
      %v2371 = vmul.f32 %v2266, %v2354
      %v2372 = vmul.f32 %v2271, %v2354
      %v2373 = vmul.f32 %v2276, %v2354
      %v2374 = vmul.f32 %v2281, %v2354
      %v2375 = vmul.f32 %v2286, %v2354
      %v2376 = vmul.f32 %v2291, %v2354
      %v2377 = vmul.f32 %v2296, %v2354
      %v2378 = vmul.f32 %v2301, %v2354
      %v2379 = vmul.f32 %v2306, %v2354
      %v2380 = vmul.f32 %v2311, %v2354
      %v2381 = vmul.f32 %v2316, %v2354
      %v2382 = vmul.f32 %v2321, %v2354
      %v2383 = vmul.f32 %v2326, %v2354
      %v2384 = vmul.f32 %v2331, %v2354
      %v2385 = vmul.f32 %v2336, %v2354
      %v2386 = vmul.f32 %v2341, %v2354
      %v2387 = vmul.f32 %v2346, %v2354
      %v2388 = vld [vmem:[%s9] sm:$0x1]
      %v2390 = vlaneseq
      %v2391 = vshrl.u32 %v2390, 7
      %v2392 = vsub.s32 0, %v2391
      %v2393 = vrot.slane %v2388, %v2392
      %v2395 = vadd.f32 %v2356, %v2393
      %v2396 = vadd.f32 %v2357, %v2393
      %v2397 = vadd.f32 %v2358, %v2393
      %v2398 = vadd.f32 %v2359, %v2393
      %v2399 = vadd.f32 %v2360, %v2393
      %v2400 = vadd.f32 %v2361, %v2393
      %v2401 = vadd.f32 %v2362, %v2393
      %v2402 = vadd.f32 %v2363, %v2393
      %v2403 = vadd.f32 %v2364, %v2393
      %v2404 = vadd.f32 %v2365, %v2393
      %v2405 = vadd.f32 %v2366, %v2393
      %v2406 = vadd.f32 %v2367, %v2393
      %v2407 = vadd.f32 %v2368, %v2393
      %v2408 = vadd.f32 %v2369, %v2393
      %v2409 = vadd.f32 %v2370, %v2393
      %v2410 = vadd.f32 %v2371, %v2393
      %v2411 = vadd.f32 %v2372, %v2393
      %v2412 = vadd.f32 %v2373, %v2393
      %v2413 = vadd.f32 %v2374, %v2393
      %v2414 = vadd.f32 %v2375, %v2393
      %v2415 = vadd.f32 %v2376, %v2393
      %v2416 = vadd.f32 %v2377, %v2393
      %v2417 = vadd.f32 %v2378, %v2393
      %v2418 = vadd.f32 %v2379, %v2393
      %v2419 = vadd.f32 %v2380, %v2393
      %v2420 = vadd.f32 %v2381, %v2393
      %v2421 = vadd.f32 %v2382, %v2393
      %v2422 = vadd.f32 %v2383, %v2393
      %v2423 = vadd.f32 %v2384, %v2393
      %v2424 = vadd.f32 %v2385, %v2393
      %v2425 = vadd.f32 %v2386, %v2393
      %v2426 = vadd.f32 %v2387, %v2393
      %v2427 = vadd.f32 %v2395, %v360
      %v2428 = vadd.f32 %v2396, %v361
      %v2429 = vadd.f32 %v2397, %v362
      %v2430 = vadd.f32 %v2398, %v363
      %v2431 = vadd.f32 %v2399, %v364
      %v2432 = vadd.f32 %v2400, %v365
      %v2433 = vadd.f32 %v2401, %v366
      %v2434 = vadd.f32 %v2402, %v367
      %v2435 = vadd.f32 %v2403, %v368
      %v2436 = vadd.f32 %v2404, %v369
      %v2437 = vadd.f32 %v2405, %v370
      %v2438 = vadd.f32 %v2406, %v371
      %v2439 = vadd.f32 %v2407, %v372
      %v2440 = vadd.f32 %v2408, %v373
      %v2441 = vadd.f32 %v2409, %v374
      %v2442 = vadd.f32 %v2410, %v375
      %v2443 = vadd.f32 %v2411, %v376
      %v2444 = vadd.f32 %v2412, %v377
      %v2445 = vadd.f32 %v2413, %v378
      %v2446 = vadd.f32 %v2414, %v379
      %v2447 = vadd.f32 %v2415, %v380
      %v2448 = vadd.f32 %v2416, %v381
      %v2449 = vadd.f32 %v2417, %v382
      %v2450 = vadd.f32 %v2418, %v383
      %v2451 = vadd.f32 %v2419, %v384
      %v2452 = vadd.f32 %v2420, %v385
      %v2453 = vadd.f32 %v2421, %v386
      %v2454 = vadd.f32 %v2422, %v387
      %v2455 = vadd.f32 %v2423, %v388
      %v2456 = vadd.f32 %v2424, %v389
      %v2457 = vadd.f32 %v2425, %v390
      %v2458 = vadd.f32 %v2426, %v391
      %2459 = vst.msk [vmem:[%s359] sm:$0xff] %vm393, %v2427
      %2460 = vst.msk [vmem:[%s359 + $0x8] sm:$0xff] %vm393, %v2428
      %2461 = vst.msk [vmem:[%s359 + $0x10] sm:$0xff] %vm393, %v2429
      %2462 = vst.msk [vmem:[%s359 + $0x18] sm:$0xff] %vm393, %v2430
      %2463 = vst.msk [vmem:[%s359 + $0x20] sm:$0xff] %vm393, %v2431
      %2464 = vst.msk [vmem:[%s359 + $0x28] sm:$0xff] %vm393, %v2432
      %2465 = vst.msk [vmem:[%s359 + $0x30] sm:$0xff] %vm393, %v2433
      %2466 = vst.msk [vmem:[%s359 + $0x38] sm:$0xff] %vm393, %v2434
      %2467 = vst.msk [vmem:[%s359 + $0x40] sm:$0xff] %vm393, %v2435
      %2468 = vst.msk [vmem:[%s359 + $0x48] sm:$0xff] %vm393, %v2436
      %2469 = vst.msk [vmem:[%s359 + $0x50] sm:$0xff] %vm393, %v2437
      %2470 = vst.msk [vmem:[%s359 + $0x58] sm:$0xff] %vm393, %v2438
      %2471 = vst.msk [vmem:[%s359 + $0x60] sm:$0xff] %vm393, %v2439
      %2472 = vst.msk [vmem:[%s359 + $0x68] sm:$0xff] %vm393, %v2440
      %2473 = vst.msk [vmem:[%s359 + $0x70] sm:$0xff] %vm393, %v2441
      %2474 = vst.msk [vmem:[%s359 + $0x78] sm:$0xff] %vm393, %v2442
      %2475 = vst.msk [vmem:[%s359 + $0x80] sm:$0xff] %vm393, %v2443
      %2476 = vst.msk [vmem:[%s359 + $0x88] sm:$0xff] %vm393, %v2444
      %2477 = vst.msk [vmem:[%s359 + $0x90] sm:$0xff] %vm393, %v2445
      %2478 = vst.msk [vmem:[%s359 + $0x98] sm:$0xff] %vm393, %v2446
      %2479 = vst.msk [vmem:[%s359 + $0xa0] sm:$0xff] %vm393, %v2447
      %2480 = vst.msk [vmem:[%s359 + $0xa8] sm:$0xff] %vm393, %v2448
      %2481 = vst.msk [vmem:[%s359 + $0xb0] sm:$0xff] %vm393, %v2449
      %2482 = vst.msk [vmem:[%s359 + $0xb8] sm:$0xff] %vm393, %v2450
      %2483 = vst.msk [vmem:[%s359 + $0xc0] sm:$0xff] %vm393, %v2451
      %2484 = vst.msk [vmem:[%s359 + $0xc8] sm:$0xff] %vm393, %v2452
      %2485 = vst.msk [vmem:[%s359 + $0xd0] sm:$0xff] %vm393, %v2453
      %2486 = vst.msk [vmem:[%s359 + $0xd8] sm:$0xff] %vm393, %v2454
      %2487 = vst.msk [vmem:[%s359 + $0xe0] sm:$0xff] %vm393, %v2455
      %2488 = vst.msk [vmem:[%s359 + $0xe8] sm:$0xff] %vm393, %v2456
      %2489 = vst.msk [vmem:[%s359 + $0xf0] sm:$0xff] %vm393, %v2457
      %2490 = vst.msk [vmem:[%s359 + $0xf8] sm:$0xff] %vm393, %v2458
      %p2491 = scmp.lt.s32.totalorder %s21, 1
      %s2492 = scalar_select %p2491, %s21, 1
      %s2493 = smul.addr %s2492, 32
      %s2494 = smul.addr %s2493, 8
      %s2495 = scalar_lea.vmem %s10, %s2494
      // Predicated region
      $region61: #{tpu_custom_call.1} parent=59 // pred_check
        %p2496 = pneg %p254
      $region62: #{tpu_custom_call.1} parent=59 // pred_check_branch
        %2498 = sbr.rel (%p2496) target = $region64
      $region63: #{tpu_custom_call.1} parent=59 // pred_region
        _
      $region64: #{tpu_custom_call.1} parent=59 // pred_fallthru
        _
    $region60: #{tpu_custom_call.1} parent=5 // pred_fallthru
      _
    %p2499 = scmp.le.s32.totalorder 2, %s16
    // Predicated region
    $region65: #{tpu_custom_call.1} parent=5 // pred_check
      %p2500 = pneg %p2499
    $region66: #{tpu_custom_call.1} parent=5 // pred_check_branch
      %2502 = sbr.rel (%p2500) target = $region68
    $region67: #{tpu_custom_call.1} parent=5 // pred_region
      %s2503 = ssub.s32 %s16, 2
      // Predicated region
      $region69: #{tpu_custom_call.1} parent=67 // pred_check
        %p2504 = pneg %p260
      $region70: #{tpu_custom_call.1} parent=67 // pred_check_branch
        %2506 = sbr.rel (%p2504) target = $region72
      $region71: #{tpu_custom_call.1} parent=67 // pred_region
        %p2507 = scmp.lt.s32.totalorder %s22, 1
        %s2508 = scalar_select %p2507, %s22, 1
        %s2509 = smul.addr %s2508, 32
        %s2510 = smul.addr %s2509, 8
        %s2511 = scalar_lea.vmem %s10, %s2510
      $region72: #{tpu_custom_call.1} parent=67 // pred_fallthru
        _
    $region68: #{tpu_custom_call.1} parent=5 // pred_fallthru
      _
  $region6: #{tpu_custom_call.1} parent=0 // loop_footer
    %s20 = sadd.s32 1, %s16
  $region7: #{tpu_custom_call.1} parent=0 // loop_footer_branch
    %15 = sbr.rel target = $region3
  $region8: #{tpu_custom_call.1} parent=0 // loop_exit
    _

</llo_original>
